<compile_context>
chip_gen: v5e
topology: v5e:2x2
jax: 0.10.0
libtpu: 0.0.40
codegen_flags: <defaults>
</compile_context>

<pallas_src>
import math
import functools

import jax
import jax.numpy as jnp
from jax.experimental import pallas as pl
from jax.experimental.pallas import tpu as pltpu


def _detect_vmem_limit():
    """Scoped-VMEM budget: ~3/4 of physical VMEM, capped at 100 MiB.
    Conservative 48 MiB fallback keeps v7x's 64 MiB physical VMEM safe."""
    try:
        cap = int(pltpu.get_tpu_info().vmem_capacity_bytes)
    except Exception:
        cap = 64 * 1024 * 1024
    return min((cap * 3) // 4, 100 * 1024 * 1024)


VMEM_LIMIT = _detect_vmem_limit()


def _tile(dim, cap, mult):
    """Largest multiple-of-`mult` divisor of `dim` that is <= cap, else `dim`."""
    if dim <= cap:
        return dim
    t = (cap // mult) * mult
    while t >= mult:
        if dim % t == 0:
            return t
        t -= mult
    return dim


def _round_up(x, m):
    return ((x + m - 1) // m) * m


# ----------------------------------------------------------------------------
# Kernel 0: fused K/V projection (computed once per batch row, NOT per L tile)
#   grid = (N, S_pad/tS); both axes parallel.
# ----------------------------------------------------------------------------
def _kv_proj_kernel(mem_ref, wkv_ref, bkv_ref, k_ref, v_ref, *, d_model):
    m = mem_ref[0]                                             # (tS, E) bf16
    kv = jnp.dot(m, wkv_ref[...],
                 preferred_element_type=jnp.float32) + bkv_ref[...]   # (tS, 2E) f32
    k_ref[0] = kv[:, :d_model].astype(jnp.bfloat16)
    v_ref[0] = kv[:, d_model:].astype(jnp.bfloat16)


# ----------------------------------------------------------------------------
# Kernel 1: fused cross-attention block
#   grid = (N, L/tL); both axes parallel (no reduction axis, no accumulators).
#   y = LayerNorm(tgt + MHA(tgt, memory, memory) @ Wo + bo)
# ----------------------------------------------------------------------------
def _attn_block_kernel(tgt_ref, k_ref, v_ref, wq_ref, bq_ref, wo_ref, bo_ref,
                       g_ref, be_ref, *out_refs,
                       scale, nhead, head_dim, s_valid, eps, need_weights):
    y_ref = out_refs[0]
    w_ref = out_refs[1] if need_weights else None

    x_f32 = tgt_ref[0]                                # (tL, E) f32 residual
    x = x_f32.astype(jnp.bfloat16)
    k = k_ref[0]                                      # (S_pad, E) bf16 (precomputed)
    v = v_ref[0]                                      # (S_pad, E) bf16 (precomputed)
    s_pad = k.shape[0]

    # Full-width Q projection: one (tL,E)@(E,E) MXU matmul.
    q = (jnp.dot(x, wq_ref[...], preferred_element_type=jnp.float32)
         + bq_ref[...]).astype(jnp.bfloat16)          # (tL, E)

    # Mask for zero-padded memory rows (S padded to a multiple of 128 so the
    # attention-weight writeback is lane-dense).
    col = jax.lax.broadcasted_iota(jnp.int32, (1, s_pad), 1)
    valid = col < s_valid                              # (1, S_pad)

    ctx_parts = []
    w_acc = None
    for h in range(nhead):                             # static loop over heads
        lo = h * head_dim
        hi = lo + head_dim
        q_h = q[:, lo:hi]                              # (tL, Dh) bf16
        k_h = k[:, lo:hi]                              # (S_pad, Dh) bf16
        v_h = v[:, lo:hi]                              # (S_pad, Dh) bf16

        # Same dot_general orientation as the reference flash kernel
        # (contraction on the last dim of both operands).
        s = jnp.einsum("ld,sd->ls", q_h, k_h,
                       preferred_element_type=jnp.float32) * scale   # (tL, S_pad)
        s = jnp.where(valid, s, -1e30)
        s_max = jnp.max(s, axis=-1, keepdims=True)
        e = jnp.exp(s - s_max)
        l = jnp.sum(e, axis=-1, keepdims=True)
        # Exact reciprocal, computed ONCE and reused for both the context
        # normalization and the returned probabilities (they stay consistent).
        p = e * (1.0 / l)                              # (tL, S_pad) f32

        ctx_parts.append(jnp.dot(p.astype(jnp.bfloat16), v_h,
                                 preferred_element_type=jnp.float32))  # (tL, Dh)
        if need_weights:
            w_acc = p if w_acc is None else w_acc + p

    ctx = jnp.concatenate(ctx_parts, axis=-1)          # (tL, E) f32

    # Single full-width output projection: (tL,E)@(E,E).
    attn_out = jnp.dot(ctx.astype(jnp.bfloat16), wo_ref[...],
                       preferred_element_type=jnp.float32)

    # Residual + LayerNorm (f32 epilogue), written once (lane-dense).
    y = attn_out + bo_ref[...] + x_f32
    mu = jnp.mean(y, axis=-1, keepdims=True)
    var = jnp.mean((y - mu) ** 2, axis=-1, keepdims=True)
    y_ref[0] = (y - mu) * jax.lax.rsqrt(var + eps) * g_ref[...] + be_ref[...]

    if need_weights:
        w_ref[0] = w_acc * (1.0 / nhead)               # single lane-dense store


# ----------------------------------------------------------------------------
# Kernel 2a: fused FFN block with VMEM-resident W1/W2 (preferred path)
#   grid = (M/tm,); weights use a constant index_map -> DMA'd once.
# ----------------------------------------------------------------------------
def _ffn_resident_kernel(x_ref, w1_ref, b1_ref, w2_ref, b2_ref, g_ref, be_ref,
                         y_ref, *, eps):
    x_f32 = x_ref[...]                                 # (tm, E) f32 residual
    x = x_f32.astype(jnp.bfloat16)

    hid = jnp.dot(x, w1_ref[...], preferred_element_type=jnp.float32)
    hid = jnp.maximum(hid + b1_ref[...], 0.0)          # relu in f32
    out = jnp.dot(hid.astype(jnp.bfloat16), w2_ref[...],
                  preferred_element_type=jnp.float32)  # (tm, E)

    y = out + b2_ref[...] + x_f32
    mu = jnp.mean(y, axis=-1, keepdims=True)
    var = jnp.mean((y - mu) ** 2, axis=-1, keepdims=True)
    y_ref[...] = (y - mu) * jax.lax.rsqrt(var + eps) * g_ref[...] + be_ref[...]


# ----------------------------------------------------------------------------
# Kernel 2b: fused FFN block, dim_feedforward tiled as a reduction grid axis
#   (fallback only, when W1/W2 do not fit in VMEM).
# ----------------------------------------------------------------------------
def _ffn_tiled_kernel(x_ref, w1_ref, b1_ref, w2_ref, b2_ref, g_ref, be_ref,
                      y_ref, *, eps):
    f = pl.program_id(1)
    nf = pl.num_programs(1)

    x_f32 = x_ref[...]
    x = x_f32.astype(jnp.bfloat16)

    hid = jnp.dot(x, w1_ref[...], preferred_element_type=jnp.float32)
    hid = jnp.maximum(hid + b1_ref[...], 0.0)
    part = jnp.dot(hid.astype(jnp.bfloat16), w2_ref[...],
                   preferred_element_type=jnp.float32)

    @pl.when(f == 0)
    def _():
        y_ref[...] = part

    @pl.when(f > 0)
    def _():
        y_ref[...] += part

    @pl.when(f == nf - 1)
    def _():
        y = y_ref[...] + b2_ref[...] + x_f32
        mu = jnp.mean(y, axis=-1, keepdims=True)
        var = jnp.mean((y - mu) ** 2, axis=-1, keepdims=True)
        y_ref[...] = (y - mu) * jax.lax.rsqrt(var + eps) * g_ref[...] + be_ref[...]


# ----------------------------------------------------------------------------
# Full decoder layer forward (jit-wrapped)
# ----------------------------------------------------------------------------
@functools.partial(jax.jit, static_argnums=(3, 4))
def transformer_decoder_layer(tgt, memory, params, nhead, need_weights=True):
    """
    tgt:    (L, N, E) f32
    memory: (S, N, E) f32
    returns (out (L, N, E) f32, attn_weights (N, L, S) f32 or None)
    """
    L, N, E = tgt.shape
    S = memory.shape[0]
    H = nhead
    Dh = E // H
    eps = 1e-5
    scale = 1.0 / math.sqrt(Dh)

    # Pad S so K/V blocks and the attn-weight writeback are lane-dense (128).
    S_pad = _round_up(S, 128)

    # Batch-major layout so per-batch tiles are contiguous rectangles.
    tgt_bm = jnp.transpose(tgt, (1, 0, 2))                           # (N, L, E) f32
    mem_bm = jnp.transpose(memory, (1, 0, 2)).astype(jnp.bfloat16)   # (N, S, E) bf16
    if S_pad != S:
        mem_bm = jnp.pad(mem_bm, ((0, 0), (0, S_pad - S), (0, 0)))

    # ---- 0) K/V projection: once per batch row, never per L tile ------------
    tS = _tile(S_pad, 512, 128)
    k_bm, v_bm = pl.pallas_call(
        functools.partial(_kv_proj_kernel, d_model=E),
        out_shape=(jax.ShapeDtypeStruct((N, S_pad, E), jnp.bfloat16),
                   jax.ShapeDtypeStruct((N, S_pad, E), jnp.bfloat16)),
        grid=(N, S_pad // tS),
        in_specs=[
            pl.BlockSpec((1, tS, E), lambda b, st: (b, st, 0)),     # memory tile
            pl.BlockSpec((E, 2 * E), lambda b, st: (0, 0)),         # [Wk^T | Wv^T]
            pl.BlockSpec((1, 2 * E), lambda b, st: (0, 0)),         # [bk | bv]
        ],
        out_specs=(
            pl.BlockSpec((1, tS, E), lambda b, st: (b, st, 0)),
            pl.BlockSpec((1, tS, E), lambda b, st: (b, st, 0)),
        ),
        compiler_params=pltpu.CompilerParams(
            dimension_semantics=("parallel", "parallel"),
            vmem_limit_bytes=VMEM_LIMIT),
    )(mem_bm, params["wkv_t"], params["bkv"])

    # ---- 1) fused attention + residual + LayerNorm ---------------------------
    # Cap tL so the f32 (tL, S_pad) score/prob temporaries (+ the weight output
    # block) stay comfortably inside the VMEM budget (matters on v7x / large S).
    bytes_per_row = 8 * S_pad * 4 + 8 * E * 4
    tl_cap = max(8, min(512, ((VMEM_LIMIT // 3) // max(bytes_per_row, 1)) // 8 * 8))
    tL = _tile(L, tl_cap, 8)

    attn_out_shape = [jax.ShapeDtypeStruct((N, L, E), jnp.float32)]
    attn_out_specs = [pl.BlockSpec((1, tL, E), lambda b, lt: (b, lt, 0))]
    if need_weights:
        attn_out_shape.append(jax.ShapeDtypeStruct((N, L, S_pad), jnp.float32))
        attn_out_specs.append(pl.BlockSpec((1, tL, S_pad), lambda b, lt: (b, lt, 0)))

    attn_results = pl.pallas_call(
        functools.partial(_attn_block_kernel, scale=scale, nhead=H, head_dim=Dh,
                          s_valid=S, eps=eps, need_weights=need_weights),
        out_shape=tuple(attn_out_shape),
        grid=(N, L // tL),
        in_specs=[
            pl.BlockSpec((1, tL, E), lambda b, lt: (b, lt, 0)),     # tgt tile (f32)
            pl.BlockSpec((1, S_pad, E), lambda b, lt: (b, 0, 0)),   # K (resident over lt)
            pl.BlockSpec((1, S_pad, E), lambda b, lt: (b, 0, 0)),   # V (resident over lt)
            pl.BlockSpec((E, E), lambda b, lt: (0, 0)),             # Wq (full width)
            pl.BlockSpec((1, E), lambda b, lt: (0, 0)),             # bq
            pl.BlockSpec((E, E), lambda b, lt: (0, 0)),             # Wo (full width)
            pl.BlockSpec((1, E), lambda b, lt: (0, 0)),             # bo
            pl.BlockSpec((1, E), lambda b, lt: (0, 0)),             # norm2 gamma
            pl.BlockSpec((1, E), lambda b, lt: (0, 0)),             # norm2 beta
        ],
        out_specs=tuple(attn_out_specs),
        compiler_params=pltpu.CompilerParams(
            dimension_semantics=("parallel", "parallel"),
            vmem_limit_bytes=VMEM_LIMIT),
    )(tgt_bm, k_bm, v_bm, params["wq_t"], params["bq"], params["wo_t"],
      params["bo"], params["g2"], params["be2"])

    if need_weights:
        y1_bm, attn_w = attn_results
        attn_w = attn_w[:, :, :S]                      # strip the S padding
    else:
        (y1_bm,) = attn_results
        attn_w = None

    # ---- 2) fused FFN + residual + LayerNorm ---------------------------------
    M = N * L
    F_dim = params["w1_t"].shape[1]
    y1_2d = y1_bm.reshape(M, E)
    tm = _tile(M, 512, 8)

    resident_weight_bytes = 2 * (E * F_dim) * 2        # bf16 W1 + W2
    if resident_weight_bytes <= VMEM_LIMIT // 3:
        # W1/W2 fully VMEM-resident: DMA'd once, no reduction axis, no RMW.
        y2 = pl.pallas_call(
            functools.partial(_ffn_resident_kernel, eps=eps),
            out_shape=jax.ShapeDtypeStruct((M, E), jnp.float32),
            grid=(M // tm,),
            in_specs=[
                pl.BlockSpec((tm, E), lambda i: (i, 0)),       # y1 rows
                pl.BlockSpec((E, F_dim), lambda i: (0, 0)),    # W1 (resident)
                pl.BlockSpec((1, F_dim), lambda i: (0, 0)),    # b1
                pl.BlockSpec((F_dim, E), lambda i: (0, 0)),    # W2 (resident)
                pl.BlockSpec((1, E), lambda i: (0, 0)),        # b2
                pl.BlockSpec((1, E), lambda i: (0, 0)),        # norm3 gamma
                pl.BlockSpec((1, E), lambda i: (0, 0)),        # norm3 beta
            ],
            out_specs=pl.BlockSpec((tm, E), lambda i: (i, 0)),
            compiler_params=pltpu.CompilerParams(
                dimension_semantics=("parallel",),
                vmem_limit_bytes=VMEM_LIMIT),
        )(y1_2d, params["w1_t"], params["b1"], params["w2_t"], params["b2"],
          params["g3"], params["be3"])
    else:
        tf = _tile(F_dim, 2048, 128)
        y2 = pl.pallas_call(
            functools.partial(_ffn_tiled_kernel, eps=eps),
            out_shape=jax.ShapeDtypeStruct((M, E), jnp.float32),
            grid=(M // tm, F_dim // tf),
            in_specs=[
                pl.BlockSpec((tm, E), lambda i, f: (i, 0)),
                pl.BlockSpec((E, tf), lambda i, f: (0, f)),
                pl.BlockSpec((1, tf), lambda i, f: (0, f)),
                pl.BlockSpec((tf, E), lambda i, f: (f, 0)),
                pl.BlockSpec((1, E), lambda i, f: (0, 0)),
                pl.BlockSpec((1, E), lambda i, f: (0, 0)),
                pl.BlockSpec((1, E), lambda i, f: (0, 0)),
            ],
            out_specs=pl.BlockSpec((tm, E), lambda i, f: (i, 0)),
            compiler_params=pltpu.CompilerParams(
                dimension_semantics=("parallel", "arbitrary"),
                vmem_limit_bytes=VMEM_LIMIT),
        )(y1_2d, params["w1_t"], params["b1"], params["w2_t"], params["b2"],
          params["g3"], params["be3"])

    out = jnp.transpose(y2.reshape(N, L, E), (1, 0, 2))    # back to (L, N, E)
    return out, attn_w


# ----------------------------------------------------------------------------
# Parameters: synthetic PyTorch-layout init + one-time kernel-layout prep
# ----------------------------------------------------------------------------
def init_params(key, d_model, nhead, dim_feedforward):
    """PyTorch-shaped parameters ([out, in] weights)."""
    E, F = d_model, dim_feedforward
    ks = jax.random.split(key, 12)

    def u(k, shape, fan_in):
        bound = 1.0 / math.sqrt(fan_in)
        return jax.random.uniform(k, shape, jnp.float32, -bound, bound)

    return dict(
        wq=u(ks[0], (E, E), E), bq=u(ks[1], (E,), E),
        wk=u(ks[2], (E, E), E), bk=u(ks[3], (E,), E),
        wv=u(ks[4], (E, E), E), bv=u(ks[5], (E,), E),
        wo=u(ks[6], (E, E), E), bo=u(ks[7], (E,), E),
        w1=u(ks[8], (F, E), E), b1=u(ks[9], (F,), E),
        w2=u(ks[10], (E, F), F), b2=u(ks[11], (E,), F),
        g2=jnp.ones((E,), jnp.float32), be2=jnp.zeros((E,), jnp.float32),
        g3=jnp.ones((E,), jnp.float32), be3=jnp.zeros((E,), jnp.float32),
    )


def prepare_params(p, nhead):
    """One-time re-layout: pre-transposed, fused, bf16 MXU weights."""
    E = p["wq"].shape[0]
    F = p["w1"].shape[0]
    bf16 = jnp.bfloat16

    return dict(
        wq_t=jnp.transpose(p["wq"]).astype(bf16),              # (E, E)
        bq=p["bq"].reshape(1, E),
        wkv_t=jnp.concatenate([jnp.transpose(p["wk"]),
                               jnp.transpose(p["wv"])], axis=1).astype(bf16),  # (E, 2E)
        bkv=jnp.concatenate([p["bk"], p["bv"]]).reshape(1, 2 * E),
        wo_t=jnp.transpose(p["wo"]).astype(bf16),               # (E, E)
        bo=p["bo"].reshape(1, E),
        g2=p["g2"].reshape(1, E), be2=p["be2"].reshape(1, E),
        w1_t=jnp.transpose(p["w1"]).astype(bf16), b1=p["b1"].reshape(1, F),
        w2_t=jnp.transpose(p["w2"]).astype(bf16), b2=p["b2"].reshape(1, E),
        g3=p["g3"].reshape(1, E), be3=p["be3"].reshape(1, E),
    )


# ----------------------------------------------------------------------------
# Pure-JAX reference (f32) for a sanity check
# ----------------------------------------------------------------------------
def _reference(tgt, memory, p, nhead):
    L, N, E = tgt.shape
    S = memory.shape[0]
    H = nhead
    Dh = E // H

    def lin(x, w, b):
        return x @ w.T + b

    q = lin(tgt, p["wq"], p["bq"]).reshape(L, N, H, Dh).transpose(1, 2, 0, 3)
    k = lin(memory, p["wk"], p["bk"]).reshape(S, N, H, Dh).transpose(1, 2, 0, 3)
    v = lin(memory, p["wv"], p["bv"]).reshape(S, N, H, Dh).transpose(1, 2, 0, 3)
    s = jnp.einsum("nhld,nhsd->nhls", q, k) / math.sqrt(Dh)
    probs = jax.nn.softmax(s, axis=-1)
    ctx = jnp.einsum("nhls,nhsd->nhld", probs, v)
    ctx = ctx.transpose(2, 0, 1, 3).reshape(L, N, E)
    attn_out = lin(ctx, p["wo"], p["bo"])

    def ln(x, g, b):
        mu = x.mean(-1, keepdims=True)
        var = ((x - mu) ** 2).mean(-1, keepdims=True)
        return (x - mu) / jnp.sqrt(var + 1e-5) * g + b

    y1 = ln(tgt + attn_out, p["g2"], p["be2"])
    ff = jnp.maximum(y1 @ p["w1"].T + p["b1"], 0.0) @ p["w2"].T + p["b2"]
    y2 = ln(y1 + ff, p["g3"], p["be3"])
    return y2, probs.mean(axis=1)


# TODO(synk): dropout (p=0.1) is modeled in eval mode (identity); training-mode
# stochastic masks are not implemented in the kernels.
# TODO(synk): S is kept whole per grid step (no flash-style online softmax over
# S tiles) because the module must return exact head-averaged attention
# probabilities; when need_weights=False the S axis could additionally become a
# reduction axis with m/l/acc scratch.

if __name__ == "__main__":
    d_model, nhead, dim_ff = 32, 4, 64
    L, S, N = 8, 10, 2  # tgt len, memory len, batch

    key = jax.random.PRNGKey(0)
    k_tgt, k_mem, k_par = jax.random.split(key, 3)

    tgt = jax.random.normal(k_tgt, (L, N, d_model), jnp.float32)
    memory = jax.random.normal(k_mem, (S, N, d_model), jnp.float32)

    torch_layout = init_params(k_par, d_model, nhead, dim_ff)
    params = prepare_params(torch_layout, nhead)

    out, attn_w = transformer_decoder_layer(tgt, memory, params, nhead, True)
    out = jax.block_until_ready(out)
    attn_w = jax.block_until_ready(attn_w)

    assert out.shape == (L, N, d_model)
    assert attn_w.shape == (N, L, S)
    # softmax rows of the head-averaged attention weights sum to 1
    assert bool(jnp.allclose(jnp.sum(attn_w, axis=-1), 1.0, atol=1e-4))
    assert bool(jnp.all(jnp.isfinite(out)))

    # Loose check against a pure-JAX f32 reference (kernels run bf16 MXU math).
    ref_out, ref_w = _reference(tgt, memory, torch_layout, nhead)
    rel_l2 = jnp.linalg.norm(out - ref_out) / jnp.linalg.norm(ref_out)
    assert bool(rel_l2 < 2e-2), f"relative L2 error too large: {rel_l2}"
    assert bool(jnp.max(jnp.abs(attn_w - ref_w)) < 2e-2)

    print("KERNEL_OK")
</pallas_src>

<mosaic_0001>
module attributes {stable_mosaic.version = 11 : i64} {
  func.func @_ffn_resident_kernel(%arg0: i32, %arg1: memref<16x32xf32, #tpu.memory_space<vmem>>, %arg2: memref<32x64xbf16, #tpu.memory_space<vmem>>, %arg3: memref<1x64xf32, #tpu.memory_space<vmem>>, %arg4: memref<64x32xbf16, #tpu.memory_space<vmem>>, %arg5: memref<1x32xf32, #tpu.memory_space<vmem>>, %arg6: memref<1x32xf32, #tpu.memory_space<vmem>>, %arg7: memref<1x32xf32, #tpu.memory_space<vmem>>, %arg8: memref<16x32xf32, #tpu.memory_space<vmem>>) attributes {dimension_semantics = [#tpu.dimension_semantics<parallel>], iteration_bounds = array<i64: 1>, scalar_prefetch = 0 : i64, scratch_operands = 0 : i64, tpu.core_type = #tpu.core_type<tc>, window_params = [{transform_indices = @transform_0, window_bounds = array<i64: 16, 32>}, {pipeline_mode = #tpu.pipeline_mode<synchronous>, transform_indices = @transform_1, window_bounds = array<i64: 32, 64>}, {pipeline_mode = #tpu.pipeline_mode<synchronous>, transform_indices = @transform_2, window_bounds = array<i64: 1, 64>}, {pipeline_mode = #tpu.pipeline_mode<synchronous>, transform_indices = @transform_3, window_bounds = array<i64: 64, 32>}, {pipeline_mode = #tpu.pipeline_mode<synchronous>, transform_indices = @transform_4, window_bounds = array<i64: 1, 32>}, {pipeline_mode = #tpu.pipeline_mode<synchronous>, transform_indices = @transform_5, window_bounds = array<i64: 1, 32>}, {pipeline_mode = #tpu.pipeline_mode<synchronous>, transform_indices = @transform_6, window_bounds = array<i64: 1, 32>}, {transform_indices = @transform_7, window_bounds = array<i64: 16, 32>}]} {
    %c0 = arith.constant 0 : index
    %c0_0 = arith.constant 0 : index
    %0 = vector.load %arg1[%c0, %c0_0] : memref<16x32xf32, #tpu.memory_space<vmem>>, vector<16x32xf32>
    %1 = arith.truncf %0 : vector<16x32xf32> to vector<16x32xbf16>
    %c0_1 = arith.constant 0 : index
    %c0_2 = arith.constant 0 : index
    %2 = vector.load %arg2[%c0_1, %c0_2] : memref<32x64xbf16, #tpu.memory_space<vmem>>, vector<32x64xbf16>
    %cst = arith.constant dense<0.000000e+00> : vector<16x64xf32>
    %3 = tpu.matmul %1, %2, %cst {dimension_numbers = #tpu.dot_dimension_numbers<[1], [0], [0], [1], [0, 0, 1, 1], [], []>} : vector<16x32xbf16>, vector<32x64xbf16>, vector<16x64xf32> -> vector<16x64xf32>
    %c0_3 = arith.constant 0 : index
    %c0_4 = arith.constant 0 : index
    %4 = vector.load %arg3[%c0_3, %c0_4] : memref<1x64xf32, #tpu.memory_space<vmem>>, vector<1x64xf32>
    %5 = vector.broadcast %4 : vector<1x64xf32> to vector<16x64xf32>
    %6 = arith.addf %3, %5 : vector<16x64xf32>
    %cst_5 = arith.constant 0.000000e+00 : f32
    %7 = vector.broadcast %cst_5 : f32 to vector<16x64xf32>
    %8 = arith.maximumf %6, %7 : vector<16x64xf32>
    %9 = arith.truncf %8 : vector<16x64xf32> to vector<16x64xbf16>
    %c0_6 = arith.constant 0 : index
    %c0_7 = arith.constant 0 : index
    %10 = vector.load %arg4[%c0_6, %c0_7] : memref<64x32xbf16, #tpu.memory_space<vmem>>, vector<64x32xbf16>
    %cst_8 = arith.constant dense<0.000000e+00> : vector<16x32xf32>
    %11 = tpu.matmul %9, %10, %cst_8 {dimension_numbers = #tpu.dot_dimension_numbers<[1], [0], [0], [1], [0, 0, 1, 1], [], []>} : vector<16x64xbf16>, vector<64x32xbf16>, vector<16x32xf32> -> vector<16x32xf32>
    %c0_9 = arith.constant 0 : index
    %c0_10 = arith.constant 0 : index
    %12 = vector.load %arg5[%c0_9, %c0_10] : memref<1x32xf32, #tpu.memory_space<vmem>>, vector<1x32xf32>
    %13 = vector.broadcast %12 : vector<1x32xf32> to vector<16x32xf32>
    %14 = arith.addf %11, %13 : vector<16x32xf32>
    %15 = arith.addf %14, %0 : vector<16x32xf32>
    %cst_11 = arith.constant dense<0.000000e+00> : vector<16xf32>
    %16 = vector.multi_reduction <add>, %15, %cst_11 [1] : vector<16x32xf32> to vector<16xf32>
    %17 = vector.shape_cast %16 : vector<16xf32> to vector<16x1xf32>
    %cst_12 = arith.constant 3.200000e+01 : f32
    %18 = vector.broadcast %cst_12 : f32 to vector<16x1xf32>
    %19 = arith.divf %17, %18 : vector<16x1xf32>
    %20 = vector.broadcast %19 : vector<16x1xf32> to vector<16x32xf32>
    %21 = arith.subf %15, %20 : vector<16x32xf32>
    %22 = arith.mulf %21, %21 : vector<16x32xf32>
    %cst_13 = arith.constant dense<0.000000e+00> : vector<16xf32>
    %23 = vector.multi_reduction <add>, %22, %cst_13 [1] : vector<16x32xf32> to vector<16xf32>
    %24 = vector.shape_cast %23 : vector<16xf32> to vector<16x1xf32>
    %cst_14 = arith.constant 3.200000e+01 : f32
    %25 = vector.broadcast %cst_14 : f32 to vector<16x1xf32>
    %26 = arith.divf %24, %25 : vector<16x1xf32>
    %27 = vector.broadcast %19 : vector<16x1xf32> to vector<16x32xf32>
    %28 = arith.subf %15, %27 : vector<16x32xf32>
    %cst_15 = arith.constant 9.99999974E-6 : f32
    %29 = vector.broadcast %cst_15 : f32 to vector<16x1xf32>
    %30 = arith.addf %26, %29 : vector<16x1xf32>
    %31 = math.rsqrt %30 : vector<16x1xf32>
    %32 = vector.broadcast %31 : vector<16x1xf32> to vector<16x32xf32>
    %33 = arith.mulf %28, %32 : vector<16x32xf32>
    %c0_16 = arith.constant 0 : index
    %c0_17 = arith.constant 0 : index
    %34 = vector.load %arg6[%c0_16, %c0_17] : memref<1x32xf32, #tpu.memory_space<vmem>>, vector<1x32xf32>
    %35 = vector.broadcast %34 : vector<1x32xf32> to vector<16x32xf32>
    %36 = arith.mulf %33, %35 : vector<16x32xf32>
    %c0_18 = arith.constant 0 : index
    %c0_19 = arith.constant 0 : index
    %37 = vector.load %arg7[%c0_18, %c0_19] : memref<1x32xf32, #tpu.memory_space<vmem>>, vector<1x32xf32>
    %38 = vector.broadcast %37 : vector<1x32xf32> to vector<16x32xf32>
    %39 = arith.addf %36, %38 : vector<16x32xf32>
    %c0_20 = arith.constant 0 : index
    %c0_21 = arith.constant 0 : index
    %40 = vector.load %arg8[%c0_20, %c0_21] : memref<16x32xf32, #tpu.memory_space<vmem>>, vector<16x32xf32>
    tpu.vector_store %arg8[%c0_20, %c0_21], %39 {strides = array<i32>} : memref<16x32xf32, #tpu.memory_space<vmem>>, vector<16x32xf32>,
    return
  }
  func.func @transform_0(%arg0: i32) -> (i32, i32) {
    %c0_i32 = arith.constant 0 : i32
    %c0_i32_0 = arith.constant 0 : i32
    return %arg0, %c0_i32 : i32, i32
  }
  func.func @transform_1(%arg0: i32) -> (i32, i32) {
    %c0_i32 = arith.constant 0 : i32
    %c0_i32_0 = arith.constant 0 : i32
    %c0_i32_1 = arith.constant 0 : i32
    return %c0_i32, %c0_i32_0 : i32, i32
  }
  func.func @transform_2(%arg0: i32) -> (i32, i32) {
    %c0_i32 = arith.constant 0 : i32
    %c0_i32_0 = arith.constant 0 : i32
    %c0_i32_1 = arith.constant 0 : i32
    return %c0_i32, %c0_i32_0 : i32, i32
  }
  func.func @transform_3(%arg0: i32) -> (i32, i32) {
    %c0_i32 = arith.constant 0 : i32
    %c0_i32_0 = arith.constant 0 : i32
    %c0_i32_1 = arith.constant 0 : i32
    return %c0_i32, %c0_i32_0 : i32, i32
  }
  func.func @transform_4(%arg0: i32) -> (i32, i32) {
    %c0_i32 = arith.constant 0 : i32
    %c0_i32_0 = arith.constant 0 : i32
    %c0_i32_1 = arith.constant 0 : i32
    return %c0_i32, %c0_i32_0 : i32, i32
  }
  func.func @transform_5(%arg0: i32) -> (i32, i32) {
    %c0_i32 = arith.constant 0 : i32
    %c0_i32_0 = arith.constant 0 : i32
    %c0_i32_1 = arith.constant 0 : i32
    return %c0_i32, %c0_i32_0 : i32, i32
  }
  func.func @transform_6(%arg0: i32) -> (i32, i32) {
    %c0_i32 = arith.constant 0 : i32
    %c0_i32_0 = arith.constant 0 : i32
    %c0_i32_1 = arith.constant 0 : i32
    return %c0_i32, %c0_i32_0 : i32, i32
  }
  func.func @transform_7(%arg0: i32) -> (i32, i32) {
    %c0_i32 = arith.constant 0 : i32
    %c0_i32_0 = arith.constant 0 : i32
    return %arg0, %c0_i32 : i32, i32
  }
}

module attributes {stable_mosaic.version = 11 : i64} {
  func.func @_kv_proj_kernel(%arg0: i32, %arg1: i32, %arg2: memref<1x128x32xbf16, #tpu.memory_space<vmem>>, %arg3: memref<32x64xbf16, #tpu.memory_space<vmem>>, %arg4: memref<1x64xf32, #tpu.memory_space<vmem>>, %arg5: memref<1x128x32xbf16, #tpu.memory_space<vmem>>, %arg6: memref<1x128x32xbf16, #tpu.memory_space<vmem>>) attributes {dimension_semantics = [#tpu.dimension_semantics<parallel>, #tpu.dimension_semantics<parallel>], iteration_bounds = array<i64: 2, 1>, scalar_prefetch = 0 : i64, scratch_operands = 0 : i64, tpu.core_type = #tpu.core_type<tc>, window_params = [{transform_indices = @transform_0, window_bounds = array<i64: 1, 128, 32>}, {pipeline_mode = #tpu.pipeline_mode<synchronous>, transform_indices = @transform_1, window_bounds = array<i64: 32, 64>}, {pipeline_mode = #tpu.pipeline_mode<synchronous>, transform_indices = @transform_2, window_bounds = array<i64: 1, 64>}, {transform_indices = @transform_3, window_bounds = array<i64: 1, 128, 32>}, {transform_indices = @transform_4, window_bounds = array<i64: 1, 128, 32>}]} {
    %c0 = arith.constant 0 : index
    %c0_0 = arith.constant 0 : index
    %c0_1 = arith.constant 0 : index
    %0 = vector.load %arg2[%c0, %c0_0, %c0_1] : memref<1x128x32xbf16, #tpu.memory_space<vmem>>, vector<1x128x32xbf16>
    %1 = vector.shape_cast %0 : vector<1x128x32xbf16> to vector<128x32xbf16>
    %c0_2 = arith.constant 0 : index
    %c0_3 = arith.constant 0 : index
    %2 = vector.load %arg3[%c0_2, %c0_3] : memref<32x64xbf16, #tpu.memory_space<vmem>>, vector<32x64xbf16>
    %cst = arith.constant dense<0.000000e+00> : vector<128x64xf32>
    %3 = tpu.matmul %1, %2, %cst {dimension_numbers = #tpu.dot_dimension_numbers<[1], [0], [0], [1], [0, 0, 1, 1], [], []>} : vector<128x32xbf16>, vector<32x64xbf16>, vector<128x64xf32> -> vector<128x64xf32>
    %c0_4 = arith.constant 0 : index
    %c0_5 = arith.constant 0 : index
    %4 = vector.load %arg4[%c0_4, %c0_5] : memref<1x64xf32, #tpu.memory_space<vmem>>, vector<1x64xf32>
    %5 = vector.broadcast %4 : vector<1x64xf32> to vector<128x64xf32>
    %6 = arith.addf %3, %5 : vector<128x64xf32>
    %7 = vector.extract_strided_slice %6 {offsets = [0, 0], sizes = [128, 32], strides = [1, 1]} : vector<128x64xf32> to vector<128x32xf32>
    %8 = arith.truncf %7 : vector<128x32xf32> to vector<128x32xbf16>
    %c0_6 = arith.constant 0 : index
    %c0_7 = arith.constant 0 : index
    %c0_8 = arith.constant 0 : index
    %9 = vector.load %arg5[%c0_6, %c0_7, %c0_8] : memref<1x128x32xbf16, #tpu.memory_space<vmem>>, vector<1x128x32xbf16>
    %10 = vector.shape_cast %9 : vector<1x128x32xbf16> to vector<128x32xbf16>
    %11 = vector.shape_cast %8 : vector<128x32xbf16> to vector<1x128x32xbf16>
    tpu.vector_store %arg5[%c0_6, %c0_7, %c0_8], %11 {strides = array<i32>} : memref<1x128x32xbf16, #tpu.memory_space<vmem>>, vector<1x128x32xbf16>,
    %12 = vector.extract_strided_slice %6 {offsets = [0, 32], sizes = [128, 32], strides = [1, 1]} : vector<128x64xf32> to vector<128x32xf32>
    %13 = arith.truncf %12 : vector<128x32xf32> to vector<128x32xbf16>
    %c0_9 = arith.constant 0 : index
    %c0_10 = arith.constant 0 : index
    %c0_11 = arith.constant 0 : index
    %14 = vector.load %arg6[%c0_9, %c0_10, %c0_11] : memref<1x128x32xbf16, #tpu.memory_space<vmem>>, vector<1x128x32xbf16>
    %15 = vector.shape_cast %14 : vector<1x128x32xbf16> to vector<128x32xbf16>
    %16 = vector.shape_cast %13 : vector<128x32xbf16> to vector<1x128x32xbf16>
    tpu.vector_store %arg6[%c0_9, %c0_10, %c0_11], %16 {strides = array<i32>} : memref<1x128x32xbf16, #tpu.memory_space<vmem>>, vector<1x128x32xbf16>,
    return
  }
  func.func @transform_0(%arg0: i32, %arg1: i32) -> (i32, i32, i32) {
    %c0_i32 = arith.constant 0 : i32
    %c0_i32_0 = arith.constant 0 : i32
    return %arg0, %arg1, %c0_i32 : i32, i32, i32
  }
  func.func @transform_1(%arg0: i32, %arg1: i32) -> (i32, i32) {
    %c0_i32 = arith.constant 0 : i32
    %c0_i32_0 = arith.constant 0 : i32
    %c0_i32_1 = arith.constant 0 : i32
    return %c0_i32, %c0_i32_0 : i32, i32
  }
  func.func @transform_2(%arg0: i32, %arg1: i32) -> (i32, i32) {
    %c0_i32 = arith.constant 0 : i32
    %c0_i32_0 = arith.constant 0 : i32
    %c0_i32_1 = arith.constant 0 : i32
    return %c0_i32, %c0_i32_0 : i32, i32
  }
  func.func @transform_3(%arg0: i32, %arg1: i32) -> (i32, i32, i32) {
    %c0_i32 = arith.constant 0 : i32
    %c0_i32_0 = arith.constant 0 : i32
    return %arg0, %arg1, %c0_i32 : i32, i32, i32
  }
  func.func @transform_4(%arg0: i32, %arg1: i32) -> (i32, i32, i32) {
    %c0_i32 = arith.constant 0 : i32
    %c0_i32_0 = arith.constant 0 : i32
    return %arg0, %arg1, %c0_i32 : i32, i32, i32
  }
}

module attributes {stable_mosaic.version = 11 : i64} {
  func.func @_attn_block_kernel(%arg0: i32, %arg1: i32, %arg2: memref<1x8x32xf32, #tpu.memory_space<vmem>>, %arg3: memref<1x128x32xbf16, #tpu.memory_space<vmem>>, %arg4: memref<1x128x32xbf16, #tpu.memory_space<vmem>>, %arg5: memref<32x32xbf16, #tpu.memory_space<vmem>>, %arg6: memref<1x32xf32, #tpu.memory_space<vmem>>, %arg7: memref<32x32xbf16, #tpu.memory_space<vmem>>, %arg8: memref<1x32xf32, #tpu.memory_space<vmem>>, %arg9: memref<1x32xf32, #tpu.memory_space<vmem>>, %arg10: memref<1x32xf32, #tpu.memory_space<vmem>>, %arg11: memref<1x8x32xf32, #tpu.memory_space<vmem>>, %arg12: memref<1x8x128xf32, #tpu.memory_space<vmem>>) attributes {dimension_semantics = [#tpu.dimension_semantics<parallel>, #tpu.dimension_semantics<parallel>], iteration_bounds = array<i64: 2, 1>, scalar_prefetch = 0 : i64, scratch_operands = 0 : i64, tpu.core_type = #tpu.core_type<tc>, window_params = [{transform_indices = @transform_0, window_bounds = array<i64: 1, 8, 32>}, {transform_indices = @transform_1, window_bounds = array<i64: 1, 128, 32>}, {transform_indices = @transform_2, window_bounds = array<i64: 1, 128, 32>}, {pipeline_mode = #tpu.pipeline_mode<synchronous>, transform_indices = @transform_3, window_bounds = array<i64: 32, 32>}, {pipeline_mode = #tpu.pipeline_mode<synchronous>, transform_indices = @transform_4, window_bounds = array<i64: 1, 32>}, {pipeline_mode = #tpu.pipeline_mode<synchronous>, transform_indices = @transform_5, window_bounds = array<i64: 32, 32>}, {pipeline_mode = #tpu.pipeline_mode<synchronous>, transform_indices = @transform_6, window_bounds = array<i64: 1, 32>}, {pipeline_mode = #tpu.pipeline_mode<synchronous>, transform_indices = @transform_7, window_bounds = array<i64: 1, 32>}, {pipeline_mode = #tpu.pipeline_mode<synchronous>, transform_indices = @transform_8, window_bounds = array<i64: 1, 32>}, {transform_indices = @transform_9, window_bounds = array<i64: 1, 8, 32>}, {transform_indices = @transform_10, window_bounds = array<i64: 1, 8, 128>}]} {
    %c0 = arith.constant 0 : index
    %c0_0 = arith.constant 0 : index
    %c0_1 = arith.constant 0 : index
    %0 = vector.load %arg2[%c0, %c0_0, %c0_1] : memref<1x8x32xf32, #tpu.memory_space<vmem>>, vector<1x8x32xf32>
    %1 = vector.shape_cast %0 : vector<1x8x32xf32> to vector<8x32xf32>
    %2 = arith.truncf %1 : vector<8x32xf32> to vector<8x32xbf16>
    %c0_2 = arith.constant 0 : index
    %c0_3 = arith.constant 0 : index
    %c0_4 = arith.constant 0 : index
    %3 = vector.load %arg3[%c0_2, %c0_3, %c0_4] : memref<1x128x32xbf16, #tpu.memory_space<vmem>>, vector<1x128x32xbf16>
    %4 = vector.shape_cast %3 : vector<1x128x32xbf16> to vector<128x32xbf16>
    %c0_5 = arith.constant 0 : index
    %c0_6 = arith.constant 0 : index
    %c0_7 = arith.constant 0 : index
    %5 = vector.load %arg4[%c0_5, %c0_6, %c0_7] : memref<1x128x32xbf16, #tpu.memory_space<vmem>>, vector<1x128x32xbf16>
    %6 = vector.shape_cast %5 : vector<1x128x32xbf16> to vector<128x32xbf16>
    %c0_8 = arith.constant 0 : index
    %c0_9 = arith.constant 0 : index
    %7 = vector.load %arg5[%c0_8, %c0_9] : memref<32x32xbf16, #tpu.memory_space<vmem>>, vector<32x32xbf16>
    %cst = arith.constant dense<0.000000e+00> : vector<8x32xf32>
    %8 = tpu.matmul %2, %7, %cst {dimension_numbers = #tpu.dot_dimension_numbers<[1], [0], [0], [1], [0, 0, 1, 1], [], []>} : vector<8x32xbf16>, vector<32x32xbf16>, vector<8x32xf32> -> vector<8x32xf32>
    %c0_10 = arith.constant 0 : index
    %c0_11 = arith.constant 0 : index
    %9 = vector.load %arg6[%c0_10, %c0_11] : memref<1x32xf32, #tpu.memory_space<vmem>>, vector<1x32xf32>
    %10 = vector.broadcast %9 : vector<1x32xf32> to vector<8x32xf32>
    %11 = arith.addf %8, %10 : vector<8x32xf32>
    %12 = arith.truncf %11 : vector<8x32xf32> to vector<8x32xbf16>
    %13 = tpu.iota {dimensions = array<i32: 1>} : vector<1x128xi32>
    %c10_i32 = arith.constant 10 : i32
    %14 = vector.broadcast %c10_i32 : i32 to vector<1x128xi32>
    %15 = arith.cmpi slt, %13, %14 : vector<1x128xi32>
    %16 = vector.extract_strided_slice %12 {offsets = [0, 0], sizes = [8, 8], strides = [1, 1]} : vector<8x32xbf16> to vector<8x8xbf16>
    %17 = vector.extract_strided_slice %4 {offsets = [0, 0], sizes = [128, 8], strides = [1, 1]} : vector<128x32xbf16> to vector<128x8xbf16>
    %18 = vector.extract_strided_slice %6 {offsets = [0, 0], sizes = [128, 8], strides = [1, 1]} : vector<128x32xbf16> to vector<128x8xbf16>
    "tpu.trace_start"() <{level = 10 : i32, message = "ld,sd->ls"}> : () -> ()
    %cst_12 = arith.constant dense<0.000000e+00> : vector<8x128xf32>
    %19 = tpu.matmul %16, %17, %cst_12 {dimension_numbers = #tpu.dot_dimension_numbers<[1], [1], [0], [0], [0, 0, 1, 0], [], []>} : vector<8x8xbf16>, vector<128x8xbf16>, vector<8x128xf32> -> vector<8x128xf32>
    "tpu.trace_stop"() : () -> ()
    %cst_13 = arith.constant 0.353553385 : f32
    %20 = vector.broadcast %cst_13 : f32 to vector<8x128xf32>
    %21 = arith.mulf %19, %20 : vector<8x128xf32>
    %cst_14 = arith.constant -1.000000e+30 : f32
    %22 = vector.shape_cast %15 : vector<1x128xi1> to vector<1x128xi1>
    %23 = vector.broadcast %22 : vector<1x128xi1> to vector<8x128xi1>
    %24 = vector.broadcast %cst_14 : f32 to vector<8x128xf32>
    %25 = arith.select %23, %21, %24 : vector<8x128xi1>, vector<8x128xf32>
    %cst_15 = arith.constant dense<0xFF800000> : vector<8xf32>
    %26 = vector.multi_reduction <maximumf>, %25, %cst_15 [1] : vector<8x128xf32> to vector<8xf32>
    %27 = vector.shape_cast %26 : vector<8xf32> to vector<8x1xf32>
    %28 = vector.broadcast %27 : vector<8x1xf32> to vector<8x128xf32>
    %29 = arith.subf %25, %28 : vector<8x128xf32>
    %30 = math.exp %29 : vector<8x128xf32>
    %cst_16 = arith.constant dense<0.000000e+00> : vector<8xf32>
    %31 = vector.multi_reduction <add>, %30, %cst_16 [1] : vector<8x128xf32> to vector<8xf32>
    %32 = vector.shape_cast %31 : vector<8xf32> to vector<8x1xf32>
    %cst_17 = arith.constant 1.000000e+00 : f32
    %33 = vector.broadcast %cst_17 : f32 to vector<8x1xf32>
    %34 = arith.divf %33, %32 : vector<8x1xf32>
    %35 = vector.broadcast %34 : vector<8x1xf32> to vector<8x128xf32>
    %36 = arith.mulf %30, %35 : vector<8x128xf32>
    %37 = arith.truncf %36 : vector<8x128xf32> to vector<8x128xbf16>
    %cst_18 = arith.constant dense<0.000000e+00> : vector<8x8xf32>
    %38 = tpu.matmul %37, %18, %cst_18 {dimension_numbers = #tpu.dot_dimension_numbers<[1], [0], [0], [1], [0, 0, 1, 1], [], []>} : vector<8x128xbf16>, vector<128x8xbf16>, vector<8x8xf32> -> vector<8x8xf32>
    %39 = vector.extract_strided_slice %12 {offsets = [0, 8], sizes = [8, 8], strides = [1, 1]} : vector<8x32xbf16> to vector<8x8xbf16>
    %40 = vector.extract_strided_slice %4 {offsets = [0, 8], sizes = [128, 8], strides = [1, 1]} : vector<128x32xbf16> to vector<128x8xbf16>
    %41 = vector.extract_strided_slice %6 {offsets = [0, 8], sizes = [128, 8], strides = [1, 1]} : vector<128x32xbf16> to vector<128x8xbf16>
    "tpu.trace_start"() <{level = 10 : i32, message = "ld,sd->ls"}> : () -> ()
    %cst_19 = arith.constant dense<0.000000e+00> : vector<8x128xf32>
    %42 = tpu.matmul %39, %40, %cst_19 {dimension_numbers = #tpu.dot_dimension_numbers<[1], [1], [0], [0], [0, 0, 1, 0], [], []>} : vector<8x8xbf16>, vector<128x8xbf16>, vector<8x128xf32> -> vector<8x128xf32>
    "tpu.trace_stop"() : () -> ()
    %cst_20 = arith.constant 0.353553385 : f32
    %43 = vector.broadcast %cst_20 : f32 to vector<8x128xf32>
    %44 = arith.mulf %42, %43 : vector<8x128xf32>
    %cst_21 = arith.constant -1.000000e+30 : f32
    %45 = vector.shape_cast %15 : vector<1x128xi1> to vector<1x128xi1>
    %46 = vector.broadcast %45 : vector<1x128xi1> to vector<8x128xi1>
    %47 = vector.broadcast %cst_21 : f32 to vector<8x128xf32>
    %48 = arith.select %46, %44, %47 : vector<8x128xi1>, vector<8x128xf32>
    %cst_22 = arith.constant dense<0xFF800000> : vector<8xf32>
    %49 = vector.multi_reduction <maximumf>, %48, %cst_22 [1] : vector<8x128xf32> to vector<8xf32>
    %50 = vector.shape_cast %49 : vector<8xf32> to vector<8x1xf32>
    %51 = vector.broadcast %50 : vector<8x1xf32> to vector<8x128xf32>
    %52 = arith.subf %48, %51 : vector<8x128xf32>
    %53 = math.exp %52 : vector<8x128xf32>
    %cst_23 = arith.constant dense<0.000000e+00> : vector<8xf32>
    %54 = vector.multi_reduction <add>, %53, %cst_23 [1] : vector<8x128xf32> to vector<8xf32>
    %55 = vector.shape_cast %54 : vector<8xf32> to vector<8x1xf32>
    %cst_24 = arith.constant 1.000000e+00 : f32
    %56 = vector.broadcast %cst_24 : f32 to vector<8x1xf32>
    %57 = arith.divf %56, %55 : vector<8x1xf32>
    %58 = vector.broadcast %57 : vector<8x1xf32> to vector<8x128xf32>
    %59 = arith.mulf %53, %58 : vector<8x128xf32>
    %60 = arith.truncf %59 : vector<8x128xf32> to vector<8x128xbf16>
    %cst_25 = arith.constant dense<0.000000e+00> : vector<8x8xf32>
    %61 = tpu.matmul %60, %41, %cst_25 {dimension_numbers = #tpu.dot_dimension_numbers<[1], [0], [0], [1], [0, 0, 1, 1], [], []>} : vector<8x128xbf16>, vector<128x8xbf16>, vector<8x8xf32> -> vector<8x8xf32>
    %62 = arith.addf %36, %59 : vector<8x128xf32>
    %63 = vector.extract_strided_slice %12 {offsets = [0, 16], sizes = [8, 8], strides = [1, 1]} : vector<8x32xbf16> to vector<8x8xbf16>
    %64 = vector.extract_strided_slice %4 {offsets = [0, 16], sizes = [128, 8], strides = [1, 1]} : vector<128x32xbf16> to vector<128x8xbf16>
    %65 = vector.extract_strided_slice %6 {offsets = [0, 16], sizes = [128, 8], strides = [1, 1]} : vector<128x32xbf16> to vector<128x8xbf16>
    "tpu.trace_start"() <{level = 10 : i32, message = "ld,sd->ls"}> : () -> ()
    %cst_26 = arith.constant dense<0.000000e+00> : vector<8x128xf32>
    %66 = tpu.matmul %63, %64, %cst_26 {dimension_numbers = #tpu.dot_dimension_numbers<[1], [1], [0], [0], [0, 0, 1, 0], [], []>} : vector<8x8xbf16>, vector<128x8xbf16>, vector<8x128xf32> -> vector<8x128xf32>
    "tpu.trace_stop"() : () -> ()
    %cst_27 = arith.constant 0.353553385 : f32
    %67 = vector.broadcast %cst_27 : f32 to vector<8x128xf32>
    %68 = arith.mulf %66, %67 : vector<8x128xf32>
    %cst_28 = arith.constant -1.000000e+30 : f32
    %69 = vector.shape_cast %15 : vector<1x128xi1> to vector<1x128xi1>
    %70 = vector.broadcast %69 : vector<1x128xi1> to vector<8x128xi1>
    %71 = vector.broadcast %cst_28 : f32 to vector<8x128xf32>
    %72 = arith.select %70, %68, %71 : vector<8x128xi1>, vector<8x128xf32>
    %cst_29 = arith.constant dense<0xFF800000> : vector<8xf32>
    %73 = vector.multi_reduction <maximumf>, %72, %cst_29 [1] : vector<8x128xf32> to vector<8xf32>
    %74 = vector.shape_cast %73 : vector<8xf32> to vector<8x1xf32>
    %75 = vector.broadcast %74 : vector<8x1xf32> to vector<8x128xf32>
    %76 = arith.subf %72, %75 : vector<8x128xf32>
    %77 = math.exp %76 : vector<8x128xf32>
    %cst_30 = arith.constant dense<0.000000e+00> : vector<8xf32>
    %78 = vector.multi_reduction <add>, %77, %cst_30 [1] : vector<8x128xf32> to vector<8xf32>
    %79 = vector.shape_cast %78 : vector<8xf32> to vector<8x1xf32>
    %cst_31 = arith.constant 1.000000e+00 : f32
    %80 = vector.broadcast %cst_31 : f32 to vector<8x1xf32>
    %81 = arith.divf %80, %79 : vector<8x1xf32>
    %82 = vector.broadcast %81 : vector<8x1xf32> to vector<8x128xf32>
    %83 = arith.mulf %77, %82 : vector<8x128xf32>
    %84 = arith.truncf %83 : vector<8x128xf32> to vector<8x128xbf16>
    %cst_32 = arith.constant dense<0.000000e+00> : vector<8x8xf32>
    %85 = tpu.matmul %84, %65, %cst_32 {dimension_numbers = #tpu.dot_dimension_numbers<[1], [0], [0], [1], [0, 0, 1, 1], [], []>} : vector<8x128xbf16>, vector<128x8xbf16>, vector<8x8xf32> -> vector<8x8xf32>
    %86 = arith.addf %62, %83 : vector<8x128xf32>
    %87 = vector.extract_strided_slice %12 {offsets = [0, 24], sizes = [8, 8], strides = [1, 1]} : vector<8x32xbf16> to vector<8x8xbf16>
    %88 = vector.extract_strided_slice %4 {offsets = [0, 24], sizes = [128, 8], strides = [1, 1]} : vector<128x32xbf16> to vector<128x8xbf16>
    %89 = vector.extract_strided_slice %6 {offsets = [0, 24], sizes = [128, 8], strides = [1, 1]} : vector<128x32xbf16> to vector<128x8xbf16>
    "tpu.trace_start"() <{level = 10 : i32, message = "ld,sd->ls"}> : () -> ()
    %cst_33 = arith.constant dense<0.000000e+00> : vector<8x128xf32>
    %90 = tpu.matmul %87, %88, %cst_33 {dimension_numbers = #tpu.dot_dimension_numbers<[1], [1], [0], [0], [0, 0, 1, 0], [], []>} : vector<8x8xbf16>, vector<128x8xbf16>, vector<8x128xf32> -> vector<8x128xf32>
    "tpu.trace_stop"() : () -> ()
    %cst_34 = arith.constant 0.353553385 : f32
    %91 = vector.broadcast %cst_34 : f32 to vector<8x128xf32>
    %92 = arith.mulf %90, %91 : vector<8x128xf32>
    %cst_35 = arith.constant -1.000000e+30 : f32
    %93 = vector.shape_cast %15 : vector<1x128xi1> to vector<1x128xi1>
    %94 = vector.broadcast %93 : vector<1x128xi1> to vector<8x128xi1>
    %95 = vector.broadcast %cst_35 : f32 to vector<8x128xf32>
    %96 = arith.select %94, %92, %95 : vector<8x128xi1>, vector<8x128xf32>
    %cst_36 = arith.constant dense<0xFF800000> : vector<8xf32>
    %97 = vector.multi_reduction <maximumf>, %96, %cst_36 [1] : vector<8x128xf32> to vector<8xf32>
    %98 = vector.shape_cast %97 : vector<8xf32> to vector<8x1xf32>
    %99 = vector.broadcast %98 : vector<8x1xf32> to vector<8x128xf32>
    %100 = arith.subf %96, %99 : vector<8x128xf32>
    %101 = math.exp %100 : vector<8x128xf32>
    %cst_37 = arith.constant dense<0.000000e+00> : vector<8xf32>
    %102 = vector.multi_reduction <add>, %101, %cst_37 [1] : vector<8x128xf32> to vector<8xf32>
    %103 = vector.shape_cast %102 : vector<8xf32> to vector<8x1xf32>
    %cst_38 = arith.constant 1.000000e+00 : f32
    %104 = vector.broadcast %cst_38 : f32 to vector<8x1xf32>
    %105 = arith.divf %104, %103 : vector<8x1xf32>
    %106 = vector.broadcast %105 : vector<8x1xf32> to vector<8x128xf32>
    %107 = arith.mulf %101, %106 : vector<8x128xf32>
    %108 = arith.truncf %107 : vector<8x128xf32> to vector<8x128xbf16>
    %cst_39 = arith.constant dense<0.000000e+00> : vector<8x8xf32>
    %109 = tpu.matmul %108, %89, %cst_39 {dimension_numbers = #tpu.dot_dimension_numbers<[1], [0], [0], [1], [0, 0, 1, 1], [], []>} : vector<8x128xbf16>, vector<128x8xbf16>, vector<8x8xf32> -> vector<8x8xf32>
    %110 = arith.addf %86, %107 : vector<8x128xf32>
    %111 = tpu.concatenate %38, %61, %85, %109 in 1 : vector<8x8xf32>, vector<8x8xf32>, vector<8x8xf32>, vector<8x8xf32> -> vector<8x32xf32>
    %112 = arith.truncf %111 : vector<8x32xf32> to vector<8x32xbf16>
    %c0_40 = arith.constant 0 : index
    %c0_41 = arith.constant 0 : index
    %113 = vector.load %arg7[%c0_40, %c0_41] : memref<32x32xbf16, #tpu.memory_space<vmem>>, vector<32x32xbf16>
    %cst_42 = arith.constant dense<0.000000e+00> : vector<8x32xf32>
    %114 = tpu.matmul %112, %113, %cst_42 {dimension_numbers = #tpu.dot_dimension_numbers<[1], [0], [0], [1], [0, 0, 1, 1], [], []>} : vector<8x32xbf16>, vector<32x32xbf16>, vector<8x32xf32> -> vector<8x32xf32>
    %c0_43 = arith.constant 0 : index
    %c0_44 = arith.constant 0 : index
    %115 = vector.load %arg8[%c0_43, %c0_44] : memref<1x32xf32, #tpu.memory_space<vmem>>, vector<1x32xf32>
    %116 = vector.broadcast %115 : vector<1x32xf32> to vector<8x32xf32>
    %117 = arith.addf %114, %116 : vector<8x32xf32>
    %118 = arith.addf %117, %1 : vector<8x32xf32>
    %cst_45 = arith.constant dense<0.000000e+00> : vector<8xf32>
    %119 = vector.multi_reduction <add>, %118, %cst_45 [1] : vector<8x32xf32> to vector<8xf32>
    %120 = vector.shape_cast %119 : vector<8xf32> to vector<8x1xf32>
    %cst_46 = arith.constant 3.200000e+01 : f32
    %121 = vector.broadcast %cst_46 : f32 to vector<8x1xf32>
    %122 = arith.divf %120, %121 : vector<8x1xf32>
    %123 = vector.broadcast %122 : vector<8x1xf32> to vector<8x32xf32>
    %124 = arith.subf %118, %123 : vector<8x32xf32>
    %125 = arith.mulf %124, %124 : vector<8x32xf32>
    %cst_47 = arith.constant dense<0.000000e+00> : vector<8xf32>
    %126 = vector.multi_reduction <add>, %125, %cst_47 [1] : vector<8x32xf32> to vector<8xf32>
    %127 = vector.shape_cast %126 : vector<8xf32> to vector<8x1xf32>
    %cst_48 = arith.constant 3.200000e+01 : f32
    %128 = vector.broadcast %cst_48 : f32 to vector<8x1xf32>
    %129 = arith.divf %127, %128 : vector<8x1xf32>
    %130 = vector.broadcast %122 : vector<8x1xf32> to vector<8x32xf32>
    %131 = arith.subf %118, %130 : vector<8x32xf32>
    %cst_49 = arith.constant 9.99999974E-6 : f32
    %132 = vector.broadcast %cst_49 : f32 to vector<8x1xf32>
    %133 = arith.addf %129, %132 : vector<8x1xf32>
    %134 = math.rsqrt %133 : vector<8x1xf32>
    %135 = vector.broadcast %134 : vector<8x1xf32> to vector<8x32xf32>
    %136 = arith.mulf %131, %135 : vector<8x32xf32>
    %c0_50 = arith.constant 0 : index
    %c0_51 = arith.constant 0 : index
    %137 = vector.load %arg9[%c0_50, %c0_51] : memref<1x32xf32, #tpu.memory_space<vmem>>, vector<1x32xf32>
    %138 = vector.broadcast %137 : vector<1x32xf32> to vector<8x32xf32>
    %139 = arith.mulf %136, %138 : vector<8x32xf32>
    %c0_52 = arith.constant 0 : index
    %c0_53 = arith.constant 0 : index
    %140 = vector.load %arg10[%c0_52, %c0_53] : memref<1x32xf32, #tpu.memory_space<vmem>>, vector<1x32xf32>
    %141 = vector.broadcast %140 : vector<1x32xf32> to vector<8x32xf32>
    %142 = arith.addf %139, %141 : vector<8x32xf32>
    %c0_54 = arith.constant 0 : index
    %c0_55 = arith.constant 0 : index
    %c0_56 = arith.constant 0 : index
    %143 = vector.load %arg11[%c0_54, %c0_55, %c0_56] : memref<1x8x32xf32, #tpu.memory_space<vmem>>, vector<1x8x32xf32>
    %144 = vector.shape_cast %143 : vector<1x8x32xf32> to vector<8x32xf32>
    %145 = vector.shape_cast %142 : vector<8x32xf32> to vector<1x8x32xf32>
    tpu.vector_store %arg11[%c0_54, %c0_55, %c0_56], %145 {strides = array<i32>} : memref<1x8x32xf32, #tpu.memory_space<vmem>>, vector<1x8x32xf32>,
    %cst_57 = arith.constant 2.500000e-01 : f32
    %146 = vector.broadcast %cst_57 : f32 to vector<8x128xf32>
    %147 = arith.mulf %110, %146 : vector<8x128xf32>
    %c0_58 = arith.constant 0 : index
    %c0_59 = arith.constant 0 : index
    %c0_60 = arith.constant 0 : index
    %148 = vector.load %arg12[%c0_58, %c0_59, %c0_60] : memref<1x8x128xf32, #tpu.memory_space<vmem>>, vector<1x8x128xf32>
    %149 = vector.shape_cast %148 : vector<1x8x128xf32> to vector<8x128xf32>
    %150 = vector.shape_cast %147 : vector<8x128xf32> to vector<1x8x128xf32>
    tpu.vector_store %arg12[%c0_58, %c0_59, %c0_60], %150 {strides = array<i32>} : memref<1x8x128xf32, #tpu.memory_space<vmem>>, vector<1x8x128xf32>,
    return
  }
  func.func @transform_0(%arg0: i32, %arg1: i32) -> (i32, i32, i32) {
    %c0_i32 = arith.constant 0 : i32
    %c0_i32_0 = arith.constant 0 : i32
    return %arg0, %arg1, %c0_i32 : i32, i32, i32
  }
  func.func @transform_1(%arg0: i32, %arg1: i32) -> (i32, i32, i32) {
    %c0_i32 = arith.constant 0 : i32
    %c0_i32_0 = arith.constant 0 : i32
    %c0_i32_1 = arith.constant 0 : i32
    return %arg0, %c0_i32, %c0_i32_0 : i32, i32, i32
  }
  func.func @transform_2(%arg0: i32, %arg1: i32) -> (i32, i32, i32) {
    %c0_i32 = arith.constant 0 : i32
    %c0_i32_0 = arith.constant 0 : i32
    %c0_i32_1 = arith.constant 0 : i32
    return %arg0, %c0_i32, %c0_i32_0 : i32, i32, i32
  }
  func.func @transform_3(%arg0: i32, %arg1: i32) -> (i32, i32) {
    %c0_i32 = arith.constant 0 : i32
    %c0_i32_0 = arith.constant 0 : i32
    %c0_i32_1 = arith.constant 0 : i32
    return %c0_i32, %c0_i32_0 : i32, i32
  }
  func.func @transform_4(%arg0: i32, %arg1: i32) -> (i32, i32) {
    %c0_i32 = arith.constant 0 : i32
    %c0_i32_0 = arith.constant 0 : i32
    %c0_i32_1 = arith.constant 0 : i32
    return %c0_i32, %c0_i32_0 : i32, i32
  }
  func.func @transform_5(%arg0: i32, %arg1: i32) -> (i32, i32) {
    %c0_i32 = arith.constant 0 : i32
    %c0_i32_0 = arith.constant 0 : i32
    %c0_i32_1 = arith.constant 0 : i32
    return %c0_i32, %c0_i32_0 : i32, i32
  }
  func.func @transform_6(%arg0: i32, %arg1: i32) -> (i32, i32) {
    %c0_i32 = arith.constant 0 : i32
    %c0_i32_0 = arith.constant 0 : i32
    %c0_i32_1 = arith.constant 0 : i32
    return %c0_i32, %c0_i32_0 : i32, i32
  }
  func.func @transform_7(%arg0: i32, %arg1: i32) -> (i32, i32) {
    %c0_i32 = arith.constant 0 : i32
    %c0_i32_0 = arith.constant 0 : i32
    %c0_i32_1 = arith.constant 0 : i32
    return %c0_i32, %c0_i32_0 : i32, i32
  }
  func.func @transform_8(%arg0: i32, %arg1: i32) -> (i32, i32) {
    %c0_i32 = arith.constant 0 : i32
    %c0_i32_0 = arith.constant 0 : i32
    %c0_i32_1 = arith.constant 0 : i32
    return %c0_i32, %c0_i32_0 : i32, i32
  }
  func.func @transform_9(%arg0: i32, %arg1: i32) -> (i32, i32, i32) {
    %c0_i32 = arith.constant 0 : i32
    %c0_i32_0 = arith.constant 0 : i32
    return %arg0, %arg1, %c0_i32 : i32, i32, i32
  }
  func.func @transform_10(%arg0: i32, %arg1: i32) -> (i32, i32, i32) {
    %c0_i32 = arith.constant 0 : i32
    %c0_i32_0 = arith.constant 0 : i32
    return %arg0, %arg1, %c0_i32 : i32, i32, i32
  }
}

</mosaic_0001>

<llo_original>
// kernel: transformer_decoder_layer.5
$region0: #{transformer_decoder_layer.5}
  #allocation0 [shape = 'u32[]', space=smem, size = 0x4, offset = 0x4, fixed_abs, tag = 'smem constant byte address 0x4 - core index']
  #allocation1 [shape = 'u32[72,128]{1,0:T(1,128)}', space=vmem, size = 0x9000, scoped, tag = 'internal scratch']
  %s0 = inlined_call_operand.vmem [shape: f32[16,32], index: 0, kind: input, shape index: {}]
  %s1 = inlined_call_operand.vmem [shape: bf16[32,64], index: 1, kind: input, shape index: {}]
  %s2 = inlined_call_operand.vmem [shape: f32[1,64], index: 2, kind: input, shape index: {}]
  %s3 = inlined_call_operand.vmem [shape: bf16[64,32], index: 3, kind: input, shape index: {}]
  %s4 = inlined_call_operand.vmem [shape: f32[1,32], index: 4, kind: input, shape index: {}]
  %s5 = inlined_call_operand.vmem [shape: f32[1,32], index: 5, kind: input, shape index: {}]
  %s6 = inlined_call_operand.vmem [shape: f32[1,32], index: 6, kind: input, shape index: {}]
  %s7 = inlined_call_operand.vmem [shape: f32[16,32], index: 7, kind: output, shape index: {}]
  %s8 = sld [smem:[#allocation0]]
  $region38: #{transformer_decoder_layer.5} parent=0
    _
  %s10 = ssub.s32 1, %s8
  %s11 = scalar_select 0, %s10, %s8
  // Predicated region
  $region2: #{transformer_decoder_layer.5} parent=0 // pred_check
    _
  $region3: #{transformer_decoder_layer.5} parent=0 // pred_check_branch
    %13 = sbr.rel (0) target = $region5
  $region4: #{transformer_decoder_layer.5} parent=0 // pred_region
    _
  $region5: #{transformer_decoder_layer.5} parent=0 // pred_fallthru
    _
  // Predicated region
  $region6: #{transformer_decoder_layer.5} parent=0 // pred_check
    _
  $region7: #{transformer_decoder_layer.5} parent=0 // pred_check_branch
    %15 = sbr.rel (0) target = $region9
  $region8: #{transformer_decoder_layer.5} parent=0 // pred_region
    _
  $region9: #{transformer_decoder_layer.5} parent=0 // pred_fallthru
    _
  // Predicated region
  $region10: #{transformer_decoder_layer.5} parent=0 // pred_check
    _
  $region11: #{transformer_decoder_layer.5} parent=0 // pred_check_branch
    %17 = sbr.rel (0) target = $region13
  $region12: #{transformer_decoder_layer.5} parent=0 // pred_region
    _
  $region13: #{transformer_decoder_layer.5} parent=0 // pred_fallthru
    _
  // Predicated region
  $region14: #{transformer_decoder_layer.5} parent=0 // pred_check
    _
  $region15: #{transformer_decoder_layer.5} parent=0 // pred_check_branch
    %19 = sbr.rel (0) target = $region17
  $region16: #{transformer_decoder_layer.5} parent=0 // pred_region
    _
  $region17: #{transformer_decoder_layer.5} parent=0 // pred_fallthru
    _
  // Predicated region
  $region18: #{transformer_decoder_layer.5} parent=0 // pred_check
    _
  $region19: #{transformer_decoder_layer.5} parent=0 // pred_check_branch
    %21 = sbr.rel (0) target = $region21
  $region20: #{transformer_decoder_layer.5} parent=0 // pred_region
    _
  $region21: #{transformer_decoder_layer.5} parent=0 // pred_fallthru
    _
  // Predicated region
  $region22: #{transformer_decoder_layer.5} parent=0 // pred_check
    _
  $region23: #{transformer_decoder_layer.5} parent=0 // pred_check_branch
    %23 = sbr.rel (0) target = $region25
  $region24: #{transformer_decoder_layer.5} parent=0 // pred_region
    _
  $region25: #{transformer_decoder_layer.5} parent=0 // pred_fallthru
    _
  // Predicated region
  $region26: #{transformer_decoder_layer.5} parent=0 // pred_check
    _
  $region27: #{transformer_decoder_layer.5} parent=0 // pred_check_branch
    %25 = sbr.rel (0) target = $region29
  $region28: #{transformer_decoder_layer.5} parent=0 // pred_region
    _
  $region29: #{transformer_decoder_layer.5} parent=0 // pred_fallthru
    _
  %v27 = vld [vmem:[%s0] sm:$0xff]
  %v28 = vld [vmem:[%s0 + $0x8] sm:$0xff]
  %v29 = vpack.c.bf16 %v28, %v27
  %v30 = vld [vmem:[%s1] sm:$0xf]
  %v31 = vld [vmem:[%s1 + $0x4] sm:$0xf]
  %v32 = vld [vmem:[%s1 + $0x8] sm:$0xf]
  %v33 = vld [vmem:[%s1 + $0xc] sm:$0xf]
  %v34 = vld [vmem:[%s2] sm:$0x1]
  %v36 = vperm.slane %v34, 0
  %v42 = vunpack.c.l.b16 %v30
  %v43 = vunpack.c.l.b16 %v31
  %v44 = vunpack.c.l.b16 %v32
  %v45 = vunpack.c.l.b16 %v33
  %v46 = vpack.c.b16 %v43, %v42
  %v47 = vpack.c.b16 %v45, %v44
  %vm50 = vcmask 261120
  %v52 = vsel %vm50, %v29, 0
  %54 = vmatpush.bf16.msra.mxu0 0
  %55 = vmatpush.bf16.msra.mxu0 0
  %56 = vmatpush.bf16.msra.mxu0 0
  %57 = vmatpush.bf16.msra.mxu0 0
  %58 = vmatpush.bf16.msra.mxu0 0
  %59 = vmatpush.bf16.msra.mxu0 0
  %60 = vmatpush.bf16.msra.mxu0 %v47
  %61 = vmatpush.bf16.msra.mxu0 %v46
  %62 = vmatmul.bf16.gmra.mxu0 %v52
  %v63 = vpop.f32.mrf.mxu0
  %v64 = vadd.f32 %v36, %v63
  %v65 = vpop.f32.mrf.mxu0
  %v66 = vadd.f32 %v36, %v65
  %67 = vdwg.mxu0
  %v68 = vmax.f32 %v64, 0.0
  %v69 = vmax.f32 %v66, 0.0
  %v70 = vpack.c.bf16 %v69, %v68
  %v71 = vld [vmem:[%s3] sm:$0xf]
  %v72 = vld [vmem:[%s3 + $0x4] sm:$0xf]
  %v73 = vld [vmem:[%s3 + $0x8] sm:$0xf]
  %v74 = vld [vmem:[%s3 + $0xc] sm:$0xf]
  %v75 = vld [vmem:[%s3 + $0x10] sm:$0xf]
  %v76 = vld [vmem:[%s3 + $0x14] sm:$0xf]
  %v77 = vld [vmem:[%s3 + $0x18] sm:$0xf]
  %v78 = vld [vmem:[%s3 + $0x1c] sm:$0xf]
  %v79 = vld [vmem:[%s4] sm:$0x1]
  %v81 = vperm.slane %v79, 0
  %v91 = vunpack.c.l.b16 %v71
  %v92 = vunpack.c.l.b16 %v72
  %v93 = vunpack.c.l.b16 %v73
  %v94 = vunpack.c.l.b16 %v74
  %v95 = vunpack.c.l.b16 %v75
  %v96 = vunpack.c.l.b16 %v76
  %v97 = vunpack.c.l.b16 %v77
  %v98 = vunpack.c.l.b16 %v78
  %v99 = vpack.c.b16 %v92, %v91
  %v100 = vpack.c.b16 %v94, %v93
  %v101 = vpack.c.b16 %v96, %v95
  %v102 = vpack.c.b16 %v98, %v97
  %vm107 = vcmask 523264
  %v109 = vsel %vm107, %v70, 0
  %111 = vmatpush.bf16.msra.mxu0 0
  %112 = vmatpush.bf16.msra.mxu0 0
  %113 = vmatpush.bf16.msra.mxu0 0
  %114 = vmatpush.bf16.msra.mxu0 0
  %115 = vmatpush.bf16.msra.mxu0 %v102
  %116 = vmatpush.bf16.msra.mxu0 %v101
  %117 = vmatpush.bf16.msra.mxu0 %v100
  %118 = vmatpush.bf16.msra.mxu0 %v99
  %119 = vmatmul.bf16.gmra.mxu0 %v109
  %v120 = vpop.f32.mrf.mxu0
  %v121 = vadd.f32 %v81, %v120
  %v122 = vpop.f32.mrf.mxu0
  %v123 = vadd.f32 %v81, %v122
  %124 = vdwg.mxu0
  %v125 = vadd.f32 %v121, %v27
  %v126 = vadd.f32 %v123, %v28
  %v127 = vsel %vm50, %v125, 0.0
  %128 = vadd.xlane.f32.xlu0 %v127
  %v129 = vpop.xlane.xlu0 %128
  %v130 = vsel %vm50, %v126, 0.0
  %131 = vadd.xlane.f32.xlu0 %v130
  %v132 = vpop.xlane.xlu0 %131
  %v133 = vrcp.pop 32.0
  %v134 = vmul.f32 32.0, %v133
  %v135 = vsub.f32 1.0, %v134
  %v136 = vmul.f32 %v133, %v135
  %v137 = vadd.f32 %v133, %v136
  %vm138 = vweird.f32 %v133
  %v139 = vsel %vm138, %v133, %v137
  %v140 = vmul.f32 %v129, %v139
  %v141 = vmul.f32 %v132, %v139
  %v142 = vsub.f32 %v125, %v140
  %v143 = vsub.f32 %v126, %v141
  %v144 = vmul.f32 %v142, %v142
  %v145 = vmul.f32 %v143, %v143
  %v146 = vsel %vm50, %v144, 0.0
  %147 = vadd.xlane.f32.xlu0 %v146
  %v148 = vpop.xlane.xlu0 %147
  %v149 = vsel %vm50, %v145, 0.0
  %150 = vadd.xlane.f32.xlu0 %v149
  %v151 = vpop.xlane.xlu0 %150
  %v152 = vmul.f32 %v148, %v139
  %v153 = vmul.f32 %v151, %v139
  %v154 = vadd.f32 %v152, 1e-05
  %v155 = vadd.f32 %v153, 1e-05
  %v156 = vrsqrt.pop %v154
  %v157 = vmul.f32 %v156, %v154
  %v158 = vmul.f32 %v157, %v156
  %v159 = vmul.f32 0.5, %v158
  %v160 = vsub.f32 1.5, %v159
  %v161 = vmul.f32 %v156, %v160
  %vm162 = vweird.f32 %v154
  %vm163 = vweird.f32 %v156
  %vm164 = vmor %vm162, %vm163
  %v165 = vsel %vm164, %v156, %v161
  %v166 = vrsqrt.pop %v155
  %v167 = vmul.f32 %v166, %v155
  %v168 = vmul.f32 %v167, %v166
  %v169 = vmul.f32 0.5, %v168
  %v170 = vsub.f32 1.5, %v169
  %v171 = vmul.f32 %v166, %v170
  %vm172 = vweird.f32 %v155
  %vm173 = vweird.f32 %v166
  %vm174 = vmor %vm172, %vm173
  %v175 = vsel %vm174, %v166, %v171
  %v176 = vmul.f32 %v142, %v165
  %v177 = vmul.f32 %v143, %v175
  %v178 = vld [vmem:[%s5] sm:$0x1]
  %v180 = vperm.slane %v178, 0
  %v182 = vmul.f32 %v176, %v180
  %v183 = vmul.f32 %v177, %v180
  %v184 = vld [vmem:[%s6] sm:$0x1]
  %v186 = vperm.slane %v184, 0
  %v188 = vadd.f32 %v182, %v186
  %v189 = vadd.f32 %v183, %v186
  %190 = vst.msk [vmem:[%s7] sm:$0xff] %vm50, %v188
  %191 = vst.msk [vmem:[%s7 + $0x8] sm:$0xff] %vm50, %v189
  // Predicated region
  $region30: #{transformer_decoder_layer.5} parent=0 // pred_check
    _
  $region31: #{transformer_decoder_layer.5} parent=0 // pred_check_branch
    %193 = sbr.rel (0) target = $region33
  $region32: #{transformer_decoder_layer.5} parent=0 // pred_region
    _
  $region33: #{transformer_decoder_layer.5} parent=0 // pred_fallthru
    _
  // Predicated region
  $region34: #{transformer_decoder_layer.5} parent=0 // pred_check
    _
  $region35: #{transformer_decoder_layer.5} parent=0 // pred_check_branch
    %195 = sbr.rel (0) target = $region37
  $region36: #{transformer_decoder_layer.5} parent=0 // pred_region
    _
  $region37: #{transformer_decoder_layer.5} parent=0 // pred_fallthru
    _

// kernel: transformer_decoder_layer.3
$region0: #{transformer_decoder_layer.3}
  #allocation0 [shape = 'u32[]', space=smem, size = 0x4, offset = 0x4, fixed_abs, tag = 'smem constant byte address 0x4 - core index']
  #allocation1 [shape = 'u32[72,128]{1,0:T(1,128)}', space=vmem, size = 0x9000, scoped, tag = 'internal scratch']
  %s0 = inlined_call_operand.vmem [shape: bf16[2,128,32], index: 0, kind: input, shape index: {}]
  %s1 = inlined_call_operand.vmem [shape: bf16[32,64], index: 1, kind: input, shape index: {}]
  %s2 = inlined_call_operand.vmem [shape: f32[1,64], index: 2, kind: input, shape index: {}]
  %s3 = inlined_call_operand.vmem [shape: bf16[2,128,32], index: 3, kind: output, shape index: {0}]
  %s4 = inlined_call_operand.vmem [shape: bf16[2,128,32], index: 4, kind: output, shape index: {1}]
  %5 = xla_tuple %s3, %s4
  %s6 = sld [smem:[#allocation0]]
  $region53: #{transformer_decoder_layer.3} parent=0
    _
  %s8 = ssub.s32 1, %s6
  %s9 = scalar_select 0, %s8, %s6
  loop: start=0, step=1, limit=4
  $region2: #{transformer_decoder_layer.3} parent=0 // loop_pre_header
    _
  $region3: #{transformer_decoder_layer.3} parent=0 // loop_header
    %s11 = sphi 0, %s15
    %p12 = scmp.ge.s32.totalorder %s11, 4
    %s18 = sphi 0, %s30
    %s19 = sphi 0, %s26
    %s20 = sphi 0, %s18
    %s21 = sphi 0, %s19
    %s22 = sphi 0, %s20
    %s23 = sphi 0, %s21
    %s35 = sphi 0, %s37
    %s38 = sphi 0, %s35
    %s39 = sphi 0, %s38
    %s55 = sphi 0, %s39
    %s59 = sphi 0, %s59
    %s61 = sphi 0, %s59
    %s62 = sphi 0, %s61
    %s76 = sphi 0, %s62
    %s80 = sphi 0, %s80
    %s82 = sphi 0, %s80
    %s83 = sphi 0, %s82
    %s97 = sphi 0, %s83
    %s105 = sphi 0, %s107
    %s108 = sphi 0, %s105
    %s109 = sphi 0, %s108
    %s125 = sphi 0, %s109
    %s133 = sphi 0, %s135
    %s136 = sphi 0, %s133
    %s137 = sphi 0, %s136
    %s153 = sphi 0, %s137
  $region4: #{transformer_decoder_layer.3} parent=0 // loop_header_branch
    %14 = sbr.rel (%p12) target = $region8
  $region5: #{transformer_decoder_layer.3} parent=0 // loop_body
    %s16 = ssub.s32 %s11, 1
    %s17 = ssub.s32 %s11, 2
    %s24 = sadd.s32 1, %s19
    %p25 = scmp.ge.s32.totalorder %s24, 1
    %s26 = scalar_select %p25, 0, %s24
    %s27 = sadd.s32 1, %s18
    %s28 = scalar_select %p25, %s27, %s18
    %p29 = scmp.ge.s32.totalorder %s28, 2
    %s30 = scalar_select %p29, 0, %s28
    %s31 = ssub.s32 %s18, %s30
    %s32 = ssub.s32 %s19, %s26
    %s33 = sor.u32 %s31, %s32
    %p34 = scmp.eq.s32.totalorder %s33, 0
    %s36 = sadd.s32 %s35, 1
    %s37 = scalar_select %p34, %s35, %s36
    %p40 = pneg %p34
    %p41 = scmp.eq.s32.totalorder %s11, 1
    %p42 = por %p40, %p41
    %p43 = scmp.ne.s32.totalorder %s35, %s38
    %p44 = scmp.eq.s32.totalorder %s11, 0
    %p45 = por %p43, %p44
    %p46 = scmp.ne.s32.totalorder %s35, %s38
    %p47 = scmp.eq.s32.totalorder %s16, 1
    %p48 = por %p46, %p47
    %p49 = scmp.ne.s32.totalorder %s38, %s39
    %p50 = scmp.eq.s32.totalorder %s16, 0
    %p51 = por %p49, %p50
    %p52 = scmp.ne.s32.totalorder %s38, %s39
    %p53 = scmp.eq.s32.totalorder %s17, 1
    %p54 = por %p52, %p53
    %p56 = scmp.ne.s32.totalorder %s39, %s55
    %p57 = scmp.eq.s32.totalorder %s17, 0
    %p58 = por %p56, %p57
    %s60 = sadd.s32 %s59, 1
    %p63 = scmp.eq.s32.totalorder %s11, 1
    %p64 = scmp.ne.s32.totalorder %s59, %s61
    %p65 = scmp.eq.s32.totalorder %s11, 0
    %p66 = por %p64, %p65
    %p67 = scmp.ne.s32.totalorder %s59, %s61
    %p68 = scmp.eq.s32.totalorder %s16, 1
    %p69 = por %p67, %p68
    %p70 = scmp.ne.s32.totalorder %s61, %s62
    %p71 = scmp.eq.s32.totalorder %s16, 0
    %p72 = por %p70, %p71
    %p73 = scmp.ne.s32.totalorder %s61, %s62
    %p74 = scmp.eq.s32.totalorder %s17, 1
    %p75 = por %p73, %p74
    %p77 = scmp.ne.s32.totalorder %s62, %s76
    %p78 = scmp.eq.s32.totalorder %s17, 0
    %p79 = por %p77, %p78
    %s81 = sadd.s32 %s80, 1
    %p84 = scmp.eq.s32.totalorder %s11, 1
    %p85 = scmp.ne.s32.totalorder %s80, %s82
    %p86 = scmp.eq.s32.totalorder %s11, 0
    %p87 = por %p85, %p86
    %p88 = scmp.ne.s32.totalorder %s80, %s82
    %p89 = scmp.eq.s32.totalorder %s16, 1
    %p90 = por %p88, %p89
    %p91 = scmp.ne.s32.totalorder %s82, %s83
    %p92 = scmp.eq.s32.totalorder %s16, 0
    %p93 = por %p91, %p92
    %p94 = scmp.ne.s32.totalorder %s82, %s83
    %p95 = scmp.eq.s32.totalorder %s17, 1
    %p96 = por %p94, %p95
    %p98 = scmp.ne.s32.totalorder %s83, %s97
    %p99 = scmp.eq.s32.totalorder %s17, 0
    %p100 = por %p98, %p99
    %s101 = ssub.s32 %s18, %s30
    %s102 = ssub.s32 %s19, %s26
    %s103 = sor.u32 %s101, %s102
    %p104 = scmp.eq.s32.totalorder %s103, 0
    %s106 = sadd.s32 %s105, 1
    %s107 = scalar_select %p104, %s105, %s106
    %p110 = pneg %p104
    %p111 = scmp.eq.s32.totalorder %s11, 1
    %p112 = por %p110, %p111
    %p113 = scmp.ne.s32.totalorder %s105, %s108
    %p114 = scmp.eq.s32.totalorder %s11, 0
    %p115 = por %p113, %p114
    %p116 = scmp.ne.s32.totalorder %s105, %s108
    %p117 = scmp.eq.s32.totalorder %s16, 1
    %p118 = por %p116, %p117
    %p119 = scmp.ne.s32.totalorder %s108, %s109
    %p120 = scmp.eq.s32.totalorder %s16, 0
    %p121 = por %p119, %p120
    %p122 = scmp.ne.s32.totalorder %s108, %s109
    %p123 = scmp.eq.s32.totalorder %s17, 1
    %p124 = por %p122, %p123
    %p126 = scmp.ne.s32.totalorder %s109, %s125
    %p127 = scmp.eq.s32.totalorder %s17, 0
    %p128 = por %p126, %p127
    %s129 = ssub.s32 %s18, %s30
    %s130 = ssub.s32 %s19, %s26
    %s131 = sor.u32 %s129, %s130
    %p132 = scmp.eq.s32.totalorder %s131, 0
    %s134 = sadd.s32 %s133, 1
    %s135 = scalar_select %p132, %s133, %s134
    %p138 = pneg %p132
    %p139 = scmp.eq.s32.totalorder %s11, 1
    %p140 = por %p138, %p139
    %p141 = scmp.ne.s32.totalorder %s133, %s136
    %p142 = scmp.eq.s32.totalorder %s11, 0
    %p143 = por %p141, %p142
    %p144 = scmp.ne.s32.totalorder %s133, %s136
    %p145 = scmp.eq.s32.totalorder %s16, 1
    %p146 = por %p144, %p145
    %p147 = scmp.ne.s32.totalorder %s136, %s137
    %p148 = scmp.eq.s32.totalorder %s16, 0
    %p149 = por %p147, %p148
    %p150 = scmp.ne.s32.totalorder %s136, %s137
    %p151 = scmp.eq.s32.totalorder %s17, 1
    %p152 = por %p150, %p151
    %p154 = scmp.ne.s32.totalorder %s137, %s153
    %p155 = scmp.eq.s32.totalorder %s17, 0
    %p156 = por %p154, %p155
    %p157 = scmp.le.s32.totalorder 1, %s11
    %p158 = scmp.lt.s32.totalorder %s11, 3
    %p159 = pnand %p157, %p158
    %p160 = pneg %p159
    // Predicated region
    $region9: #{transformer_decoder_layer.3} parent=5 // pred_check
      _
    $region10: #{transformer_decoder_layer.3} parent=5 // pred_check_branch
      %162 = sbr.rel (%p159) target = $region12
    $region11: #{transformer_decoder_layer.3} parent=5 // pred_region
      %s163 = ssub.s32 %s11, 1
      // Predicated region
      $region13: #{transformer_decoder_layer.3} parent=11 // pred_check
        %p164 = pneg %p72
      $region14: #{transformer_decoder_layer.3} parent=11 // pred_check_branch
        %166 = sbr.rel (%p164) target = $region16
      $region15: #{transformer_decoder_layer.3} parent=11 // pred_region
        _
      $region16: #{transformer_decoder_layer.3} parent=11 // pred_fallthru
        _
      // Predicated region
      $region17: #{transformer_decoder_layer.3} parent=11 // pred_check
        %p167 = pneg %p93
      $region18: #{transformer_decoder_layer.3} parent=11 // pred_check_branch
        %169 = sbr.rel (%p167) target = $region20
      $region19: #{transformer_decoder_layer.3} parent=11 // pred_region
        _
      $region20: #{transformer_decoder_layer.3} parent=11 // pred_fallthru
        _
    $region12: #{transformer_decoder_layer.3} parent=5 // pred_fallthru
      _
    %p170 = scmp.lt.s32.totalorder %s11, 2
    // Predicated region
    $region21: #{transformer_decoder_layer.3} parent=5 // pred_check
      %p171 = pneg %p170
    $region22: #{transformer_decoder_layer.3} parent=5 // pred_check_branch
      %173 = sbr.rel (%p171) target = $region24
    $region23: #{transformer_decoder_layer.3} parent=5 // pred_region
      // Predicated region
      $region25: #{transformer_decoder_layer.3} parent=23 // pred_check
        %p174 = pneg %p45
      $region26: #{transformer_decoder_layer.3} parent=23 // pred_check_branch
        %176 = sbr.rel (%p174) target = $region28
      $region27: #{transformer_decoder_layer.3} parent=23 // pred_region
        %s177 = smul.u32 16, %s19
        %p178 = scmp.lt.s32.totalorder %s18, 1
        %s179 = scalar_select %p178, %s18, 1
        %p180 = scmp.lt.s32.totalorder %s177, 15
        %s181 = scalar_select %p180, %s177, 15
        %s182 = smul.addr %s179, 16
        %s183 = sadd.s32 %s181, %s182
        %s184 = smul.addr %s183, 4
        %s185 = scalar_lea.vmem %s0, %s184
        %s186 = smul.u32 16, %s19
      $region28: #{transformer_decoder_layer.3} parent=23 // pred_fallthru
        _
    $region24: #{transformer_decoder_layer.3} parent=5 // pred_fallthru
      _
    %p187 = scmp.le.s32.totalorder 1, %s11
    %p188 = scmp.lt.s32.totalorder %s11, 3
    %p189 = pnand %p187, %p188
    %p190 = pneg %p189
    // Predicated region
    $region29: #{transformer_decoder_layer.3} parent=5 // pred_check
      _
    $region30: #{transformer_decoder_layer.3} parent=5 // pred_check_branch
      %192 = sbr.rel (%p189) target = $region32
    $region31: #{transformer_decoder_layer.3} parent=5 // pred_region
      %s193 = ssub.s32 %s11, 1
      %s194 = smul.u32 16, %s21
      %p195 = scmp.lt.s32.totalorder %s20, 1
      %s196 = scalar_select %p195, %s20, 1
      %p197 = scmp.lt.s32.totalorder %s194, 15
      %s198 = scalar_select %p197, %s194, 15
      %s199 = smul.addr %s196, 16
      %s200 = sadd.s32 %s198, %s199
      %s201 = smul.addr %s200, 4
      %s202 = scalar_lea.vmem %s0, %s201
      %p203 = pneg %p51
      %p204 = pneg %p48
      %p205 = pneg %p72
      %p206 = pneg %p69
      %p207 = pneg %p93
      %p208 = pneg %p90
      %p209 = pneg %p121
      %p210 = pneg %p118
      %s211 = smul.u32 16, %s21
      %p212 = scmp.lt.s32.totalorder %s20, 1
      %s213 = scalar_select %p212, %s20, 1
      %p214 = scmp.lt.s32.totalorder %s211, 15
      %s215 = scalar_select %p214, %s211, 15
      %s216 = smul.addr %s213, 16
      %s217 = sadd.s32 %s215, %s216
      %s218 = smul.addr %s217, 4
      %s219 = scalar_lea.vmem %s3, %s218
      %p220 = pneg %p149
      %p221 = pneg %p146
      %s222 = smul.u32 16, %s21
      %p223 = scmp.lt.s32.totalorder %s20, 1
      %s224 = scalar_select %p223, %s20, 1
      %p225 = scmp.lt.s32.totalorder %s222, 15
      %s226 = scalar_select %p225, %s222, 15
      %s227 = smul.addr %s224, 16
      %s228 = sadd.s32 %s226, %s227
      %s229 = smul.addr %s228, 4
      %s230 = scalar_lea.vmem %s4, %s229
      %s231 = smul.u32 16, %s21
      %p232 = scmp.lt.s32.totalorder %s20, 1
      %s233 = scalar_select %p232, %s20, 1
      %p234 = scmp.lt.s32.totalorder %s231, 15
      %s235 = scalar_select %p234, %s231, 15
      %s236 = smul.addr %s233, 16
      %s237 = sadd.s32 %s235, %s236
      %s238 = smul.addr %s237, 4
      %s239 = scalar_lea.vmem %s0, %s238
      %s240 = smul.u32 16, %s21
      %s241 = smul.u32 16, %s21
      %p242 = scmp.lt.s32.totalorder %s20, 1
      %s243 = scalar_select %p242, %s20, 1
      %p244 = scmp.lt.s32.totalorder %s241, 15
      %s245 = scalar_select %p244, %s241, 15
      %s246 = smul.addr %s243, 16
      %s247 = sadd.s32 %s245, %s246
      %s248 = smul.addr %s247, 4
      %s249 = scalar_lea.vmem %s3, %s248
      %s250 = smul.u32 16, %s21
      %s251 = smul.u32 16, %s21
      %p252 = scmp.lt.s32.totalorder %s20, 1
      %s253 = scalar_select %p252, %s20, 1
      %p254 = scmp.lt.s32.totalorder %s251, 15
      %s255 = scalar_select %p254, %s251, 15
      %s256 = smul.addr %s253, 16
      %s257 = sadd.s32 %s255, %s256
      %s258 = smul.addr %s257, 4
      %s259 = scalar_lea.vmem %s4, %s258
      %s260 = smul.u32 16, %s21
      %v262 = vld [vmem:[%s239] sm:$0xf]
      %v263 = vld [vmem:[%s239 + $0x4] sm:$0xf]
      %v264 = vld [vmem:[%s239 + $0x8] sm:$0xf]
      %v265 = vld [vmem:[%s239 + $0xc] sm:$0xf]
      %v266 = vld [vmem:[%s239 + $0x10] sm:$0xf]
      %v267 = vld [vmem:[%s239 + $0x14] sm:$0xf]
      %v268 = vld [vmem:[%s239 + $0x18] sm:$0xf]
      %v269 = vld [vmem:[%s239 + $0x1c] sm:$0xf]
      %v270 = vld [vmem:[%s239 + $0x20] sm:$0xf]
      %v271 = vld [vmem:[%s239 + $0x24] sm:$0xf]
      %v272 = vld [vmem:[%s239 + $0x28] sm:$0xf]
      %v273 = vld [vmem:[%s239 + $0x2c] sm:$0xf]
      %v274 = vld [vmem:[%s239 + $0x30] sm:$0xf]
      %v275 = vld [vmem:[%s239 + $0x34] sm:$0xf]
      %v276 = vld [vmem:[%s239 + $0x38] sm:$0xf]
      %v277 = vld [vmem:[%s239 + $0x3c] sm:$0xf]
      %v278 = vld [vmem:[%s1] sm:$0xf]
      %v279 = vld [vmem:[%s1 + $0x4] sm:$0xf]
      %v280 = vld [vmem:[%s1 + $0x8] sm:$0xf]
      %v281 = vld [vmem:[%s1 + $0xc] sm:$0xf]
      %v282 = vld [vmem:[%s2] sm:$0x1]
      %v284 = vperm.slane %v282, 0
      %v302 = vunpack.c.l.b16 %v262
      %v303 = vunpack.c.l.b16 %v263
      %v304 = vunpack.c.l.b16 %v264
      %v305 = vunpack.c.l.b16 %v265
      %v306 = vunpack.c.l.b16 %v266
      %v307 = vunpack.c.l.b16 %v267
      %v308 = vunpack.c.l.b16 %v268
      %v309 = vunpack.c.l.b16 %v269
      %v310 = vunpack.c.l.b16 %v270
      %v311 = vunpack.c.l.b16 %v271
      %v312 = vunpack.c.l.b16 %v272
      %v313 = vunpack.c.l.b16 %v273
      %v314 = vunpack.c.l.b16 %v274
      %v315 = vunpack.c.l.b16 %v275
      %v316 = vunpack.c.l.b16 %v276
      %v317 = vunpack.c.l.b16 %v277
      %v318 = vpack.c.b16 %v303, %v302
      %v319 = vpack.c.b16 %v305, %v304
      %v320 = vpack.c.b16 %v307, %v306
      %v321 = vpack.c.b16 %v309, %v308
      %v322 = vpack.c.b16 %v311, %v310
      %v323 = vpack.c.b16 %v313, %v312
      %v324 = vpack.c.b16 %v315, %v314
      %v325 = vpack.c.b16 %v317, %v316
      %v330 = vunpack.c.l.b16 %v278
      %v331 = vunpack.c.l.b16 %v279
      %v332 = vunpack.c.l.b16 %v280
      %v333 = vunpack.c.l.b16 %v281
      %v334 = vpack.c.b16 %v331, %v330
      %v335 = vpack.c.b16 %v333, %v332
      %vm338 = vcmask 261120
      %v340 = vsel %vm338, %v318, 0
      %v343 = vsel %vm338, %v319, 0
      %v346 = vsel %vm338, %v320, 0
      %v349 = vsel %vm338, %v321, 0
      %v352 = vsel %vm338, %v322, 0
      %v355 = vsel %vm338, %v323, 0
      %v358 = vsel %vm338, %v324, 0
      %v361 = vsel %vm338, %v325, 0
      %363 = vmatpush.bf16.msra.mxu0 0
      %364 = vmatpush.bf16.msra.mxu0 0
      %365 = vmatpush.bf16.msra.mxu0 0
      %366 = vmatpush.bf16.msra.mxu0 0
      %367 = vmatpush.bf16.msra.mxu0 0
      %368 = vmatpush.bf16.msra.mxu0 0
      %369 = vmatpush.bf16.msra.mxu0 %v335
      %370 = vmatpush.bf16.msra.mxu0 %v334
      %371 = vmatmul.bf16.gmra.mxu0 %v340
      %v372 = vpop.f32.mrf.mxu0
      %v373 = vadd.f32 %v284, %v372
      %v374 = vpop.f32.mrf.mxu0
      %v375 = vadd.f32 %v284, %v374
      %376 = vmatmul.bf16.gmra.mxu0 %v343
      %v377 = vpop.f32.mrf.mxu0
      %v378 = vadd.f32 %v284, %v377
      %v379 = vpop.f32.mrf.mxu0
      %v380 = vadd.f32 %v284, %v379
      %381 = vmatmul.bf16.gmra.mxu0 %v346
      %v382 = vpop.f32.mrf.mxu0
      %v383 = vadd.f32 %v284, %v382
      %v384 = vpop.f32.mrf.mxu0
      %v385 = vadd.f32 %v284, %v384
      %386 = vmatmul.bf16.gmra.mxu0 %v349
      %v387 = vpop.f32.mrf.mxu0
      %v388 = vadd.f32 %v284, %v387
      %v389 = vpop.f32.mrf.mxu0
      %v390 = vadd.f32 %v284, %v389
      %391 = vmatmul.bf16.gmra.mxu0 %v352
      %v392 = vpop.f32.mrf.mxu0
      %v393 = vadd.f32 %v284, %v392
      %v394 = vpop.f32.mrf.mxu0
      %v395 = vadd.f32 %v284, %v394
      %396 = vmatmul.bf16.gmra.mxu0 %v355
      %v397 = vpop.f32.mrf.mxu0
      %v398 = vadd.f32 %v284, %v397
      %v399 = vpop.f32.mrf.mxu0
      %v400 = vadd.f32 %v284, %v399
      %401 = vmatmul.bf16.gmra.mxu0 %v358
      %v402 = vpop.f32.mrf.mxu0
      %v403 = vadd.f32 %v284, %v402
      %v404 = vpop.f32.mrf.mxu0
      %v405 = vadd.f32 %v284, %v404
      %406 = vmatmul.bf16.gmra.mxu0 %v361
      %v407 = vpop.f32.mrf.mxu0
      %v408 = vadd.f32 %v284, %v407
      %v409 = vpop.f32.mrf.mxu0
      %v410 = vadd.f32 %v284, %v409
      %411 = vdwg.mxu0
      %v412 = vpack.c.bf16 %v373, %v373
      %v413 = vpack.c.bf16 %v375, %v375
      %v414 = vpack.c.bf16 %v378, %v378
      %v415 = vpack.c.bf16 %v380, %v380
      %v416 = vpack.c.bf16 %v383, %v383
      %v417 = vpack.c.bf16 %v385, %v385
      %v418 = vpack.c.bf16 %v388, %v388
      %v419 = vpack.c.bf16 %v390, %v390
      %v420 = vpack.c.bf16 %v393, %v393
      %v421 = vpack.c.bf16 %v395, %v395
      %v422 = vpack.c.bf16 %v398, %v398
      %v423 = vpack.c.bf16 %v400, %v400
      %v424 = vpack.c.bf16 %v403, %v403
      %v425 = vpack.c.bf16 %v405, %v405
      %v426 = vpack.c.bf16 %v408, %v408
      %v427 = vpack.c.bf16 %v410, %v410
      %vm428 = vcmask 257024
      %429 = vst.msk [vmem:[%s249] sm:$0xf] %vm428, %v412
      %430 = vst.msk [vmem:[%s249 + $0x4] sm:$0xf] %vm428, %v413
      %431 = vst.msk [vmem:[%s249 + $0x8] sm:$0xf] %vm428, %v414
      %432 = vst.msk [vmem:[%s249 + $0xc] sm:$0xf] %vm428, %v415
      %433 = vst.msk [vmem:[%s249 + $0x10] sm:$0xf] %vm428, %v416
      %434 = vst.msk [vmem:[%s249 + $0x14] sm:$0xf] %vm428, %v417
      %435 = vst.msk [vmem:[%s249 + $0x18] sm:$0xf] %vm428, %v418
      %436 = vst.msk [vmem:[%s249 + $0x1c] sm:$0xf] %vm428, %v419
      %437 = vst.msk [vmem:[%s249 + $0x20] sm:$0xf] %vm428, %v420
      %438 = vst.msk [vmem:[%s249 + $0x24] sm:$0xf] %vm428, %v421
      %439 = vst.msk [vmem:[%s249 + $0x28] sm:$0xf] %vm428, %v422
      %440 = vst.msk [vmem:[%s249 + $0x2c] sm:$0xf] %vm428, %v423
      %441 = vst.msk [vmem:[%s249 + $0x30] sm:$0xf] %vm428, %v424
      %442 = vst.msk [vmem:[%s249 + $0x34] sm:$0xf] %vm428, %v425
      %443 = vst.msk [vmem:[%s249 + $0x38] sm:$0xf] %vm428, %v426
      %444 = vst.msk [vmem:[%s249 + $0x3c] sm:$0xf] %vm428, %v427
      %461 = vrot.lane.b32.xlu0 %v412, 96
      %v462 = vpop.permute.xlu0 %461
      %463 = vrot.lane.b32.xlu0 %v413, 96
      %v464 = vpop.permute.xlu0 %463
      %465 = vrot.lane.b32.xlu0 %v414, 96
      %v466 = vpop.permute.xlu0 %465
      %467 = vrot.lane.b32.xlu0 %v415, 96
      %v468 = vpop.permute.xlu0 %467
      %469 = vrot.lane.b32.xlu0 %v416, 96
      %v470 = vpop.permute.xlu0 %469
      %471 = vrot.lane.b32.xlu0 %v417, 96
      %v472 = vpop.permute.xlu0 %471
      %473 = vrot.lane.b32.xlu0 %v418, 96
      %v474 = vpop.permute.xlu0 %473
      %475 = vrot.lane.b32.xlu0 %v419, 96
      %v476 = vpop.permute.xlu0 %475
      %477 = vrot.lane.b32.xlu0 %v420, 96
      %v478 = vpop.permute.xlu0 %477
      %479 = vrot.lane.b32.xlu0 %v421, 96
      %v480 = vpop.permute.xlu0 %479
      %481 = vrot.lane.b32.xlu0 %v422, 96
      %v482 = vpop.permute.xlu0 %481
      %483 = vrot.lane.b32.xlu0 %v423, 96
      %v484 = vpop.permute.xlu0 %483
      %485 = vrot.lane.b32.xlu0 %v424, 96
      %v486 = vpop.permute.xlu0 %485
      %487 = vrot.lane.b32.xlu0 %v425, 96
      %v488 = vpop.permute.xlu0 %487
      %489 = vrot.lane.b32.xlu0 %v426, 96
      %v490 = vpop.permute.xlu0 %489
      %491 = vrot.lane.b32.xlu0 %v427, 96
      %v492 = vpop.permute.xlu0 %491
      %509 = vst.msk [vmem:[%s259] sm:$0xf] %vm428, %v462
      %510 = vst.msk [vmem:[%s259 + $0x4] sm:$0xf] %vm428, %v464
      %511 = vst.msk [vmem:[%s259 + $0x8] sm:$0xf] %vm428, %v466
      %512 = vst.msk [vmem:[%s259 + $0xc] sm:$0xf] %vm428, %v468
      %513 = vst.msk [vmem:[%s259 + $0x10] sm:$0xf] %vm428, %v470
      %514 = vst.msk [vmem:[%s259 + $0x14] sm:$0xf] %vm428, %v472
      %515 = vst.msk [vmem:[%s259 + $0x18] sm:$0xf] %vm428, %v474
      %516 = vst.msk [vmem:[%s259 + $0x1c] sm:$0xf] %vm428, %v476
      %517 = vst.msk [vmem:[%s259 + $0x20] sm:$0xf] %vm428, %v478
      %518 = vst.msk [vmem:[%s259 + $0x24] sm:$0xf] %vm428, %v480
      %519 = vst.msk [vmem:[%s259 + $0x28] sm:$0xf] %vm428, %v482
      %520 = vst.msk [vmem:[%s259 + $0x2c] sm:$0xf] %vm428, %v484
      %521 = vst.msk [vmem:[%s259 + $0x30] sm:$0xf] %vm428, %v486
      %522 = vst.msk [vmem:[%s259 + $0x34] sm:$0xf] %vm428, %v488
      %523 = vst.msk [vmem:[%s259 + $0x38] sm:$0xf] %vm428, %v490
      %524 = vst.msk [vmem:[%s259 + $0x3c] sm:$0xf] %vm428, %v492
      %s525 = smul.u32 16, %s21
      %p526 = scmp.lt.s32.totalorder %s20, 1
      %s527 = scalar_select %p526, %s20, 1
      %p528 = scmp.lt.s32.totalorder %s525, 15
      %s529 = scalar_select %p528, %s525, 15
      %s530 = smul.addr %s527, 16
      %s531 = sadd.s32 %s529, %s530
      %s532 = smul.addr %s531, 4
      %s533 = scalar_lea.vmem %s3, %s532
      %s534 = smul.u32 16, %s21
      %p535 = scmp.lt.s32.totalorder %s20, 1
      %s536 = scalar_select %p535, %s20, 1
      %p537 = scmp.lt.s32.totalorder %s534, 15
      %s538 = scalar_select %p537, %s534, 15
      %s539 = smul.addr %s536, 16
      %s540 = sadd.s32 %s538, %s539
      %s541 = smul.addr %s540, 4
      %s542 = scalar_lea.vmem %s4, %s541
      // Predicated region
      $region33: #{transformer_decoder_layer.3} parent=31 // pred_check
        %p543 = pneg %p118
      $region34: #{transformer_decoder_layer.3} parent=31 // pred_check_branch
        %545 = sbr.rel (%p543) target = $region36
      $region35: #{transformer_decoder_layer.3} parent=31 // pred_region
        %s546 = smul.u32 16, %s21
      $region36: #{transformer_decoder_layer.3} parent=31 // pred_fallthru
        _
      // Predicated region
      $region37: #{transformer_decoder_layer.3} parent=31 // pred_check
        %p547 = pneg %p146
      $region38: #{transformer_decoder_layer.3} parent=31 // pred_check_branch
        %549 = sbr.rel (%p547) target = $region40
      $region39: #{transformer_decoder_layer.3} parent=31 // pred_region
        %s550 = smul.u32 16, %s21
      $region40: #{transformer_decoder_layer.3} parent=31 // pred_fallthru
        _
    $region32: #{transformer_decoder_layer.3} parent=5 // pred_fallthru
      _
    %p551 = scmp.le.s32.totalorder 2, %s11
    // Predicated region
    $region41: #{transformer_decoder_layer.3} parent=5 // pred_check
      %p552 = pneg %p551
    $region42: #{transformer_decoder_layer.3} parent=5 // pred_check_branch
      %554 = sbr.rel (%p552) target = $region44
    $region43: #{transformer_decoder_layer.3} parent=5 // pred_region
      %s555 = ssub.s32 %s11, 2
      // Predicated region
      $region45: #{transformer_decoder_layer.3} parent=43 // pred_check
        %p556 = pneg %p124
      $region46: #{transformer_decoder_layer.3} parent=43 // pred_check_branch
        %558 = sbr.rel (%p556) target = $region48
      $region47: #{transformer_decoder_layer.3} parent=43 // pred_region
        %s559 = smul.u32 16, %s23
        %p560 = scmp.lt.s32.totalorder %s22, 1
        %s561 = scalar_select %p560, %s22, 1
        %p562 = scmp.lt.s32.totalorder %s559, 15
        %s563 = scalar_select %p562, %s559, 15
        %s564 = smul.addr %s561, 16
        %s565 = sadd.s32 %s563, %s564
        %s566 = smul.addr %s565, 4
        %s567 = scalar_lea.vmem %s3, %s566
      $region48: #{transformer_decoder_layer.3} parent=43 // pred_fallthru
        _
      // Predicated region
      $region49: #{transformer_decoder_layer.3} parent=43 // pred_check
        %p568 = pneg %p152
      $region50: #{transformer_decoder_layer.3} parent=43 // pred_check_branch
        %570 = sbr.rel (%p568) target = $region52
      $region51: #{transformer_decoder_layer.3} parent=43 // pred_region
        %s571 = smul.u32 16, %s23
        %p572 = scmp.lt.s32.totalorder %s22, 1
        %s573 = scalar_select %p572, %s22, 1
        %p574 = scmp.lt.s32.totalorder %s571, 15
        %s575 = scalar_select %p574, %s571, 15
        %s576 = smul.addr %s573, 16
        %s577 = sadd.s32 %s575, %s576
        %s578 = smul.addr %s577, 4
        %s579 = scalar_lea.vmem %s4, %s578
      $region52: #{transformer_decoder_layer.3} parent=43 // pred_fallthru
        _
    $region44: #{transformer_decoder_layer.3} parent=5 // pred_fallthru
      _
  $region6: #{transformer_decoder_layer.3} parent=0 // loop_footer
    %s15 = sadd.s32 1, %s11
  $region7: #{transformer_decoder_layer.3} parent=0 // loop_footer_branch
    %10 = sbr.rel target = $region3
  $region8: #{transformer_decoder_layer.3} parent=0 // loop_exit
    _

// kernel: transformer_decoder_layer.4
$region0: #{transformer_decoder_layer.4}
  #allocation0 [shape = 'u32[]', space=smem, size = 0x4, offset = 0x4, fixed_abs, tag = 'smem constant byte address 0x4 - core index']
  #allocation1 [shape = 'u32[72,128]{1,0:T(1,128)}', space=vmem, size = 0x9000, scoped, tag = 'internal scratch']
  %s0 = inlined_call_operand.vmem [shape: f32[2,8,32], index: 0, kind: input, shape index: {}]
  %s1 = inlined_call_operand.vmem [shape: bf16[2,128,32], index: 1, kind: input, shape index: {}]
  %s2 = inlined_call_operand.vmem [shape: bf16[2,128,32], index: 2, kind: input, shape index: {}]
  %s3 = inlined_call_operand.vmem [shape: bf16[32,32], index: 3, kind: input, shape index: {}]
  %s4 = inlined_call_operand.vmem [shape: f32[1,32], index: 4, kind: input, shape index: {}]
  %s5 = inlined_call_operand.vmem [shape: bf16[32,32], index: 5, kind: input, shape index: {}]
  %s6 = inlined_call_operand.vmem [shape: f32[1,32], index: 6, kind: input, shape index: {}]
  %s7 = inlined_call_operand.vmem [shape: f32[1,32], index: 7, kind: input, shape index: {}]
  %s8 = inlined_call_operand.vmem [shape: f32[1,32], index: 8, kind: input, shape index: {}]
  %s9 = inlined_call_operand.vmem [shape: f32[2,8,32], index: 9, kind: output, shape index: {0}]
  %s10 = inlined_call_operand.hbm [shape: f32[2,8,128], index: 10, kind: output, shape index: {1}]
  %11 = xla_tuple %s9, %s10
  %s12 = sld [smem:[#allocation0]]
  $region77: #{transformer_decoder_layer.4} parent=0
    _
  %s14 = ssub.s32 1, %s12
  %s15 = scalar_select 0, %s14, %s12
  $region1: #{transformer_decoder_layer.4} parent=0
    #allocation2 [shape = 'u8[8192]{0}', space=vmem, size = 0x2000, scoped, tag = 'output window, operand 1']
    #allocation3 [shape = 's32[2]{0}', space=sflag, size = 0x8, scoped, tag = 'scoped memory for transformer_decoder_layer.4']
    %16 = vsyncpa [#allocation3], 0
    %s17 = scalar_lea.sflag [#allocation3], 1
    %18 = vsyncpa %s17, 0
    loop: start=0, step=1, limit=4
    $region2: #{transformer_decoder_layer.4} parent=1 // loop_pre_header
      _
    $region3: #{transformer_decoder_layer.4} parent=1 // loop_header
      %s20 = sphi 0, %s24
      %p21 = scmp.ge.s32.totalorder %s20, 4
      %s27 = sphi 0, %s39
      %s28 = sphi 0, %s35
      %s29 = sphi 0, %s27
      %s30 = sphi 0, %s28
      %s31 = sphi 0, %s29
      %s32 = sphi 0, %s30
      %s44 = sphi 0, %s46
      %s47 = sphi 0, %s44
      %s48 = sphi 0, %s47
      %s64 = sphi 0, %s48
      %s70 = sphi 0, %s72
      %s73 = sphi 0, %s70
      %s74 = sphi 0, %s73
      %s90 = sphi 0, %s74
      %s96 = sphi 0, %s98
      %s99 = sphi 0, %s96
      %s100 = sphi 0, %s99
      %s116 = sphi 0, %s100
      %s120 = sphi 0, %s120
      %s122 = sphi 0, %s120
      %s123 = sphi 0, %s122
      %s137 = sphi 0, %s123
      %s141 = sphi 0, %s141
      %s143 = sphi 0, %s141
      %s144 = sphi 0, %s143
      %s158 = sphi 0, %s144
      %s162 = sphi 0, %s162
      %s164 = sphi 0, %s162
      %s165 = sphi 0, %s164
      %s179 = sphi 0, %s165
      %s183 = sphi 0, %s183
      %s185 = sphi 0, %s183
      %s186 = sphi 0, %s185
      %s200 = sphi 0, %s186
      %s204 = sphi 0, %s204
      %s206 = sphi 0, %s204
      %s207 = sphi 0, %s206
      %s221 = sphi 0, %s207
      %s225 = sphi 0, %s225
      %s227 = sphi 0, %s225
      %s228 = sphi 0, %s227
      %s242 = sphi 0, %s228
      %s250 = sphi 0, %s252
      %s253 = sphi 0, %s250
      %s254 = sphi 0, %s253
      %s270 = sphi 0, %s254
      %s278 = sphi 0, %s280
      %s281 = sphi 0, %s278
      %s282 = sphi 0, %s281
      %s298 = sphi 0, %s282
    $region4: #{transformer_decoder_layer.4} parent=1 // loop_header_branch
      %23 = sbr.rel (%p21) target = $region8
    $region5: #{transformer_decoder_layer.4} parent=1 // loop_body
      %s25 = ssub.s32 %s20, 1
      %s26 = ssub.s32 %s20, 2
      %s33 = sadd.s32 1, %s28
      %p34 = scmp.ge.s32.totalorder %s33, 1
      %s35 = scalar_select %p34, 0, %s33
      %s36 = sadd.s32 1, %s27
      %s37 = scalar_select %p34, %s36, %s27
      %p38 = scmp.ge.s32.totalorder %s37, 2
      %s39 = scalar_select %p38, 0, %s37
      %s40 = ssub.s32 %s27, %s39
      %s41 = ssub.s32 %s28, %s35
      %s42 = sor.u32 %s40, %s41
      %p43 = scmp.eq.s32.totalorder %s42, 0
      %s45 = sadd.s32 %s44, 1
      %s46 = scalar_select %p43, %s44, %s45
      %p49 = pneg %p43
      %p50 = scmp.eq.s32.totalorder %s20, 1
      %p51 = por %p49, %p50
      %p52 = scmp.ne.s32.totalorder %s44, %s47
      %p53 = scmp.eq.s32.totalorder %s20, 0
      %p54 = por %p52, %p53
      %p55 = scmp.ne.s32.totalorder %s44, %s47
      %p56 = scmp.eq.s32.totalorder %s25, 1
      %p57 = por %p55, %p56
      %p58 = scmp.ne.s32.totalorder %s47, %s48
      %p59 = scmp.eq.s32.totalorder %s25, 0
      %p60 = por %p58, %p59
      %p61 = scmp.ne.s32.totalorder %s47, %s48
      %p62 = scmp.eq.s32.totalorder %s26, 1
      %p63 = por %p61, %p62
      %p65 = scmp.ne.s32.totalorder %s48, %s64
      %p66 = scmp.eq.s32.totalorder %s26, 0
      %p67 = por %p65, %p66
      %s68 = ssub.s32 %s27, %s39
      %p69 = scmp.eq.s32.totalorder %s68, 0
      %s71 = sadd.s32 %s70, 1
      %s72 = scalar_select %p69, %s70, %s71
      %p75 = pneg %p69
      %p76 = scmp.eq.s32.totalorder %s20, 1
      %p77 = por %p75, %p76
      %p78 = scmp.ne.s32.totalorder %s70, %s73
      %p79 = scmp.eq.s32.totalorder %s20, 0
      %p80 = por %p78, %p79
      %p81 = scmp.ne.s32.totalorder %s70, %s73
      %p82 = scmp.eq.s32.totalorder %s25, 1
      %p83 = por %p81, %p82
      %p84 = scmp.ne.s32.totalorder %s73, %s74
      %p85 = scmp.eq.s32.totalorder %s25, 0
      %p86 = por %p84, %p85
      %p87 = scmp.ne.s32.totalorder %s73, %s74
      %p88 = scmp.eq.s32.totalorder %s26, 1
      %p89 = por %p87, %p88
      %p91 = scmp.ne.s32.totalorder %s74, %s90
      %p92 = scmp.eq.s32.totalorder %s26, 0
      %p93 = por %p91, %p92
      %s94 = ssub.s32 %s27, %s39
      %p95 = scmp.eq.s32.totalorder %s94, 0
      %s97 = sadd.s32 %s96, 1
      %s98 = scalar_select %p95, %s96, %s97
      %p101 = pneg %p95
      %p102 = scmp.eq.s32.totalorder %s20, 1
      %p103 = por %p101, %p102
      %p104 = scmp.ne.s32.totalorder %s96, %s99
      %p105 = scmp.eq.s32.totalorder %s20, 0
      %p106 = por %p104, %p105
      %p107 = scmp.ne.s32.totalorder %s96, %s99
      %p108 = scmp.eq.s32.totalorder %s25, 1
      %p109 = por %p107, %p108
      %p110 = scmp.ne.s32.totalorder %s99, %s100
      %p111 = scmp.eq.s32.totalorder %s25, 0
      %p112 = por %p110, %p111
      %p113 = scmp.ne.s32.totalorder %s99, %s100
      %p114 = scmp.eq.s32.totalorder %s26, 1
      %p115 = por %p113, %p114
      %p117 = scmp.ne.s32.totalorder %s100, %s116
      %p118 = scmp.eq.s32.totalorder %s26, 0
      %p119 = por %p117, %p118
      %s121 = sadd.s32 %s120, 1
      %p124 = scmp.eq.s32.totalorder %s20, 1
      %p125 = scmp.ne.s32.totalorder %s120, %s122
      %p126 = scmp.eq.s32.totalorder %s20, 0
      %p127 = por %p125, %p126
      %p128 = scmp.ne.s32.totalorder %s120, %s122
      %p129 = scmp.eq.s32.totalorder %s25, 1
      %p130 = por %p128, %p129
      %p131 = scmp.ne.s32.totalorder %s122, %s123
      %p132 = scmp.eq.s32.totalorder %s25, 0
      %p133 = por %p131, %p132
      %p134 = scmp.ne.s32.totalorder %s122, %s123
      %p135 = scmp.eq.s32.totalorder %s26, 1
      %p136 = por %p134, %p135
      %p138 = scmp.ne.s32.totalorder %s123, %s137
      %p139 = scmp.eq.s32.totalorder %s26, 0
      %p140 = por %p138, %p139
      %s142 = sadd.s32 %s141, 1
      %p145 = scmp.eq.s32.totalorder %s20, 1
      %p146 = scmp.ne.s32.totalorder %s141, %s143
      %p147 = scmp.eq.s32.totalorder %s20, 0
      %p148 = por %p146, %p147
      %p149 = scmp.ne.s32.totalorder %s141, %s143
      %p150 = scmp.eq.s32.totalorder %s25, 1
      %p151 = por %p149, %p150
      %p152 = scmp.ne.s32.totalorder %s143, %s144
      %p153 = scmp.eq.s32.totalorder %s25, 0
      %p154 = por %p152, %p153
      %p155 = scmp.ne.s32.totalorder %s143, %s144
      %p156 = scmp.eq.s32.totalorder %s26, 1
      %p157 = por %p155, %p156
      %p159 = scmp.ne.s32.totalorder %s144, %s158
      %p160 = scmp.eq.s32.totalorder %s26, 0
      %p161 = por %p159, %p160
      %s163 = sadd.s32 %s162, 1
      %p166 = scmp.eq.s32.totalorder %s20, 1
      %p167 = scmp.ne.s32.totalorder %s162, %s164
      %p168 = scmp.eq.s32.totalorder %s20, 0
      %p169 = por %p167, %p168
      %p170 = scmp.ne.s32.totalorder %s162, %s164
      %p171 = scmp.eq.s32.totalorder %s25, 1
      %p172 = por %p170, %p171
      %p173 = scmp.ne.s32.totalorder %s164, %s165
      %p174 = scmp.eq.s32.totalorder %s25, 0
      %p175 = por %p173, %p174
      %p176 = scmp.ne.s32.totalorder %s164, %s165
      %p177 = scmp.eq.s32.totalorder %s26, 1
      %p178 = por %p176, %p177
      %p180 = scmp.ne.s32.totalorder %s165, %s179
      %p181 = scmp.eq.s32.totalorder %s26, 0
      %p182 = por %p180, %p181
      %s184 = sadd.s32 %s183, 1
      %p187 = scmp.eq.s32.totalorder %s20, 1
      %p188 = scmp.ne.s32.totalorder %s183, %s185
      %p189 = scmp.eq.s32.totalorder %s20, 0
      %p190 = por %p188, %p189
      %p191 = scmp.ne.s32.totalorder %s183, %s185
      %p192 = scmp.eq.s32.totalorder %s25, 1
      %p193 = por %p191, %p192
      %p194 = scmp.ne.s32.totalorder %s185, %s186
      %p195 = scmp.eq.s32.totalorder %s25, 0
      %p196 = por %p194, %p195
      %p197 = scmp.ne.s32.totalorder %s185, %s186
      %p198 = scmp.eq.s32.totalorder %s26, 1
      %p199 = por %p197, %p198
      %p201 = scmp.ne.s32.totalorder %s186, %s200
      %p202 = scmp.eq.s32.totalorder %s26, 0
      %p203 = por %p201, %p202
      %s205 = sadd.s32 %s204, 1
      %p208 = scmp.eq.s32.totalorder %s20, 1
      %p209 = scmp.ne.s32.totalorder %s204, %s206
      %p210 = scmp.eq.s32.totalorder %s20, 0
      %p211 = por %p209, %p210
      %p212 = scmp.ne.s32.totalorder %s204, %s206
      %p213 = scmp.eq.s32.totalorder %s25, 1
      %p214 = por %p212, %p213
      %p215 = scmp.ne.s32.totalorder %s206, %s207
      %p216 = scmp.eq.s32.totalorder %s25, 0
      %p217 = por %p215, %p216
      %p218 = scmp.ne.s32.totalorder %s206, %s207
      %p219 = scmp.eq.s32.totalorder %s26, 1
      %p220 = por %p218, %p219
      %p222 = scmp.ne.s32.totalorder %s207, %s221
      %p223 = scmp.eq.s32.totalorder %s26, 0
      %p224 = por %p222, %p223
      %s226 = sadd.s32 %s225, 1
      %p229 = scmp.eq.s32.totalorder %s20, 1
      %p230 = scmp.ne.s32.totalorder %s225, %s227
      %p231 = scmp.eq.s32.totalorder %s20, 0
      %p232 = por %p230, %p231
      %p233 = scmp.ne.s32.totalorder %s225, %s227
      %p234 = scmp.eq.s32.totalorder %s25, 1
      %p235 = por %p233, %p234
      %p236 = scmp.ne.s32.totalorder %s227, %s228
      %p237 = scmp.eq.s32.totalorder %s25, 0
      %p238 = por %p236, %p237
      %p239 = scmp.ne.s32.totalorder %s227, %s228
      %p240 = scmp.eq.s32.totalorder %s26, 1
      %p241 = por %p239, %p240
      %p243 = scmp.ne.s32.totalorder %s228, %s242
      %p244 = scmp.eq.s32.totalorder %s26, 0
      %p245 = por %p243, %p244
      %s246 = ssub.s32 %s27, %s39
      %s247 = ssub.s32 %s28, %s35
      %s248 = sor.u32 %s246, %s247
      %p249 = scmp.eq.s32.totalorder %s248, 0
      %s251 = sadd.s32 %s250, 1
      %s252 = scalar_select %p249, %s250, %s251
      %p255 = pneg %p249
      %p256 = scmp.eq.s32.totalorder %s20, 1
      %p257 = por %p255, %p256
      %p258 = scmp.ne.s32.totalorder %s250, %s253
      %p259 = scmp.eq.s32.totalorder %s20, 0
      %p260 = por %p258, %p259
      %p261 = scmp.ne.s32.totalorder %s250, %s253
      %p262 = scmp.eq.s32.totalorder %s25, 1
      %p263 = por %p261, %p262
      %p264 = scmp.ne.s32.totalorder %s253, %s254
      %p265 = scmp.eq.s32.totalorder %s25, 0
      %p266 = por %p264, %p265
      %p267 = scmp.ne.s32.totalorder %s253, %s254
      %p268 = scmp.eq.s32.totalorder %s26, 1
      %p269 = por %p267, %p268
      %p271 = scmp.ne.s32.totalorder %s254, %s270
      %p272 = scmp.eq.s32.totalorder %s26, 0
      %p273 = por %p271, %p272
      %s274 = ssub.s32 %s27, %s39
      %s275 = ssub.s32 %s28, %s35
      %s276 = sor.u32 %s274, %s275
      %p277 = scmp.eq.s32.totalorder %s276, 0
      %s279 = sadd.s32 %s278, 1
      %s280 = scalar_select %p277, %s278, %s279
      %p283 = pneg %p277
      %p284 = scmp.eq.s32.totalorder %s20, 1
      %p285 = por %p283, %p284
      %p286 = scmp.ne.s32.totalorder %s278, %s281
      %p287 = scmp.eq.s32.totalorder %s20, 0
      %p288 = por %p286, %p287
      %p289 = scmp.ne.s32.totalorder %s278, %s281
      %p290 = scmp.eq.s32.totalorder %s25, 1
      %p291 = por %p289, %p290
      %p292 = scmp.ne.s32.totalorder %s281, %s282
      %p293 = scmp.eq.s32.totalorder %s25, 0
      %p294 = por %p292, %p293
      %p295 = scmp.ne.s32.totalorder %s281, %s282
      %p296 = scmp.eq.s32.totalorder %s26, 1
      %p297 = por %p295, %p296
      %p299 = scmp.ne.s32.totalorder %s282, %s298
      %p300 = scmp.eq.s32.totalorder %s26, 0
      %p301 = por %p299, %p300
      %p302 = scmp.le.s32.totalorder 1, %s20
      %p303 = scmp.lt.s32.totalorder %s20, 3
      %p304 = pnand %p302, %p303
      %p305 = pneg %p304
      // Predicated region
      $region9: #{transformer_decoder_layer.4} parent=5 // pred_check
        _
      $region10: #{transformer_decoder_layer.4} parent=5 // pred_check_branch
        %307 = sbr.rel (%p304) target = $region12
      $region11: #{transformer_decoder_layer.4} parent=5 // pred_region
        %s308 = ssub.s32 %s20, 1
        // Predicated region
        $region13: #{transformer_decoder_layer.4} parent=11 // pred_check
          %p309 = pneg %p133
        $region14: #{transformer_decoder_layer.4} parent=11 // pred_check_branch
          %311 = sbr.rel (%p309) target = $region16
        $region15: #{transformer_decoder_layer.4} parent=11 // pred_region
          _
        $region16: #{transformer_decoder_layer.4} parent=11 // pred_fallthru
          _
        // Predicated region
        $region17: #{transformer_decoder_layer.4} parent=11 // pred_check
          %p312 = pneg %p154
        $region18: #{transformer_decoder_layer.4} parent=11 // pred_check_branch
          %314 = sbr.rel (%p312) target = $region20
        $region19: #{transformer_decoder_layer.4} parent=11 // pred_region
          _
        $region20: #{transformer_decoder_layer.4} parent=11 // pred_fallthru
          _
        // Predicated region
        $region21: #{transformer_decoder_layer.4} parent=11 // pred_check
          %p315 = pneg %p175
        $region22: #{transformer_decoder_layer.4} parent=11 // pred_check_branch
          %317 = sbr.rel (%p315) target = $region24
        $region23: #{transformer_decoder_layer.4} parent=11 // pred_region
          _
        $region24: #{transformer_decoder_layer.4} parent=11 // pred_fallthru
          _
        // Predicated region
        $region25: #{transformer_decoder_layer.4} parent=11 // pred_check
          %p318 = pneg %p196
        $region26: #{transformer_decoder_layer.4} parent=11 // pred_check_branch
          %320 = sbr.rel (%p318) target = $region28
        $region27: #{transformer_decoder_layer.4} parent=11 // pred_region
          _
        $region28: #{transformer_decoder_layer.4} parent=11 // pred_fallthru
          _
        // Predicated region
        $region29: #{transformer_decoder_layer.4} parent=11 // pred_check
          %p321 = pneg %p217
        $region30: #{transformer_decoder_layer.4} parent=11 // pred_check_branch
          %323 = sbr.rel (%p321) target = $region32
        $region31: #{transformer_decoder_layer.4} parent=11 // pred_region
          _
        $region32: #{transformer_decoder_layer.4} parent=11 // pred_fallthru
          _
        // Predicated region
        $region33: #{transformer_decoder_layer.4} parent=11 // pred_check
          %p324 = pneg %p238
        $region34: #{transformer_decoder_layer.4} parent=11 // pred_check_branch
          %326 = sbr.rel (%p324) target = $region36
        $region35: #{transformer_decoder_layer.4} parent=11 // pred_region
          _
        $region36: #{transformer_decoder_layer.4} parent=11 // pred_fallthru
          _
      $region12: #{transformer_decoder_layer.4} parent=5 // pred_fallthru
        _
      %p327 = scmp.lt.s32.totalorder %s20, 2
      // Predicated region
      $region37: #{transformer_decoder_layer.4} parent=5 // pred_check
        %p328 = pneg %p327
      $region38: #{transformer_decoder_layer.4} parent=5 // pred_check_branch
        %330 = sbr.rel (%p328) target = $region40
      $region39: #{transformer_decoder_layer.4} parent=5 // pred_region
        // Predicated region
        $region41: #{transformer_decoder_layer.4} parent=39 // pred_check
          %p331 = pneg %p54
        $region42: #{transformer_decoder_layer.4} parent=39 // pred_check_branch
          %333 = sbr.rel (%p331) target = $region44
        $region43: #{transformer_decoder_layer.4} parent=39 // pred_region
          %p334 = scmp.lt.s32.totalorder %s27, 1
          %s335 = scalar_select %p334, %s27, 1
          %p336 = scmp.lt.s32.totalorder %s28, 0
          %s337 = scalar_select %p336, %s28, 0
          %s338 = sadd.s32 %s337, %s335
          %s339 = smul.addr %s338, 8
          %s340 = scalar_lea.vmem %s0, %s339
        $region44: #{transformer_decoder_layer.4} parent=39 // pred_fallthru
          _
        // Predicated region
        $region45: #{transformer_decoder_layer.4} parent=39 // pred_check
          %p341 = pneg %p80
        $region46: #{transformer_decoder_layer.4} parent=39 // pred_check_branch
          %343 = sbr.rel (%p341) target = $region48
        $region47: #{transformer_decoder_layer.4} parent=39 // pred_region
          %p344 = scmp.lt.s32.totalorder %s27, 1
          %s345 = scalar_select %p344, %s27, 1
          %s346 = smul.addr %s345, 16
          %s347 = smul.addr %s346, 4
          %s348 = scalar_lea.vmem %s1, %s347
        $region48: #{transformer_decoder_layer.4} parent=39 // pred_fallthru
          _
        // Predicated region
        $region49: #{transformer_decoder_layer.4} parent=39 // pred_check
          %p349 = pneg %p106
        $region50: #{transformer_decoder_layer.4} parent=39 // pred_check_branch
          %351 = sbr.rel (%p349) target = $region52
        $region51: #{transformer_decoder_layer.4} parent=39 // pred_region
          %p352 = scmp.lt.s32.totalorder %s27, 1
          %s353 = scalar_select %p352, %s27, 1
          %s354 = smul.addr %s353, 16
          %s355 = smul.addr %s354, 4
          %s356 = scalar_lea.vmem %s2, %s355
        $region52: #{transformer_decoder_layer.4} parent=39 // pred_fallthru
          _
      $region40: #{transformer_decoder_layer.4} parent=5 // pred_fallthru
        _
      %p357 = scmp.le.s32.totalorder 1, %s20
      %p358 = scmp.lt.s32.totalorder %s20, 3
      %p359 = pnand %p357, %p358
      %p360 = pneg %p359
      // Predicated region
      $region53: #{transformer_decoder_layer.4} parent=5 // pred_check
        _
      $region54: #{transformer_decoder_layer.4} parent=5 // pred_check_branch
        %362 = sbr.rel (%p359) target = $region56
      $region55: #{transformer_decoder_layer.4} parent=5 // pred_region
        %s363 = ssub.s32 %s20, 1
        %p364 = scmp.lt.s32.totalorder %s29, 1
        %s365 = scalar_select %p364, %s29, 1
        %p366 = scmp.lt.s32.totalorder %s30, 0
        %s367 = scalar_select %p366, %s30, 0
        %s368 = sadd.s32 %s367, %s365
        %s369 = smul.addr %s368, 8
        %s370 = scalar_lea.vmem %s0, %s369
        %p371 = pneg %p60
        %p372 = pneg %p57
        %p373 = scmp.lt.s32.totalorder %s29, 1
        %s374 = scalar_select %p373, %s29, 1
        %s375 = smul.addr %s374, 16
        %s376 = smul.addr %s375, 4
        %s377 = scalar_lea.vmem %s1, %s376
        %p378 = pneg %p86
        %p379 = pneg %p83
        %p380 = scmp.lt.s32.totalorder %s29, 1
        %s381 = scalar_select %p380, %s29, 1
        %s382 = smul.addr %s381, 16
        %s383 = smul.addr %s382, 4
        %s384 = scalar_lea.vmem %s2, %s383
        %p385 = pneg %p112
        %p386 = pneg %p109
        %p387 = pneg %p133
        %p388 = pneg %p130
        %p389 = pneg %p154
        %p390 = pneg %p151
        %p391 = pneg %p175
        %p392 = pneg %p172
        %p393 = pneg %p196
        %p394 = pneg %p193
        %p395 = pneg %p217
        %p396 = pneg %p214
        %p397 = pneg %p238
        %p398 = pneg %p235
        %p399 = pneg %p266
        %p400 = pneg %p263
        %p401 = scmp.lt.s32.totalorder %s29, 1
        %s402 = scalar_select %p401, %s29, 1
        %p403 = scmp.lt.s32.totalorder %s30, 0
        %s404 = scalar_select %p403, %s30, 0
        %s405 = sadd.s32 %s404, %s402
        %s406 = smul.addr %s405, 8
        %s407 = scalar_lea.vmem %s9, %s406
        %p408 = pneg %p294
        %p409 = pneg %p291
        %s410 = sand.u32 %s281, 1
        %s411 = scalar_lea.sflag [#allocation3], %s410
        %s412 = sand.u32 %s281, 1
        %s413 = smul.addr %s412, 8
        %s414 = scalar_lea.vmem [#allocation2], %s413
        %p415 = scmp.lt.s32.totalorder %s29, 1
        %s416 = scalar_select %p415, %s29, 1
        %p417 = scmp.lt.s32.totalorder %s30, 0
        %s418 = scalar_select %p417, %s30, 0
        %s419 = sadd.s32 %s418, %s416
        %s420 = smul.addr %s419, 8
        %s421 = scalar_lea.vmem %s0, %s420
        %p422 = scmp.lt.s32.totalorder %s29, 1
        %s423 = scalar_select %p422, %s29, 1
        %s424 = smul.addr %s423, 16
        %s425 = smul.addr %s424, 4
        %s426 = scalar_lea.vmem %s1, %s425
        %p427 = scmp.lt.s32.totalorder %s29, 1
        %s428 = scalar_select %p427, %s29, 1
        %s429 = smul.addr %s428, 16
        %s430 = smul.addr %s429, 4
        %s431 = scalar_lea.vmem %s2, %s430
        %p432 = scmp.lt.s32.totalorder %s29, 1
        %s433 = scalar_select %p432, %s29, 1
        %p434 = scmp.lt.s32.totalorder %s30, 0
        %s435 = scalar_select %p434, %s30, 0
        %s436 = sadd.s32 %s435, %s433
        %s437 = smul.addr %s436, 8
        %s438 = scalar_lea.vmem %s9, %s437
        %v440 = vld [vmem:[%s421] sm:$0xff]
        %v441 = vpack.c.bf16 %v440, %v440
        %v442 = vld [vmem:[%s426] sm:$0xf]
        %v443 = vld [vmem:[%s426 + $0x4] sm:$0xf]
        %v444 = vld [vmem:[%s426 + $0x8] sm:$0xf]
        %v445 = vld [vmem:[%s426 + $0xc] sm:$0xf]
        %v446 = vld [vmem:[%s426 + $0x10] sm:$0xf]
        %v447 = vld [vmem:[%s426 + $0x14] sm:$0xf]
        %v448 = vld [vmem:[%s426 + $0x18] sm:$0xf]
        %v449 = vld [vmem:[%s426 + $0x1c] sm:$0xf]
        %v450 = vld [vmem:[%s426 + $0x20] sm:$0xf]
        %v451 = vld [vmem:[%s426 + $0x24] sm:$0xf]
        %v452 = vld [vmem:[%s426 + $0x28] sm:$0xf]
        %v453 = vld [vmem:[%s426 + $0x2c] sm:$0xf]
        %v454 = vld [vmem:[%s426 + $0x30] sm:$0xf]
        %v455 = vld [vmem:[%s426 + $0x34] sm:$0xf]
        %v456 = vld [vmem:[%s426 + $0x38] sm:$0xf]
        %v457 = vld [vmem:[%s426 + $0x3c] sm:$0xf]
        %v458 = vld [vmem:[%s431] sm:$0xf]
        %v459 = vld [vmem:[%s431 + $0x4] sm:$0xf]
        %v460 = vld [vmem:[%s431 + $0x8] sm:$0xf]
        %v461 = vld [vmem:[%s431 + $0xc] sm:$0xf]
        %v462 = vld [vmem:[%s431 + $0x10] sm:$0xf]
        %v463 = vld [vmem:[%s431 + $0x14] sm:$0xf]
        %v464 = vld [vmem:[%s431 + $0x18] sm:$0xf]
        %v465 = vld [vmem:[%s431 + $0x1c] sm:$0xf]
        %v466 = vld [vmem:[%s431 + $0x20] sm:$0xf]
        %v467 = vld [vmem:[%s431 + $0x24] sm:$0xf]
        %v468 = vld [vmem:[%s431 + $0x28] sm:$0xf]
        %v469 = vld [vmem:[%s431 + $0x2c] sm:$0xf]
        %v470 = vld [vmem:[%s431 + $0x30] sm:$0xf]
        %v471 = vld [vmem:[%s431 + $0x34] sm:$0xf]
        %v472 = vld [vmem:[%s431 + $0x38] sm:$0xf]
        %v473 = vld [vmem:[%s431 + $0x3c] sm:$0xf]
        %v474 = vld [vmem:[%s3] sm:$0xf]
        %v475 = vld [vmem:[%s3 + $0x4] sm:$0xf]
        %v476 = vld [vmem:[%s3 + $0x8] sm:$0xf]
        %v477 = vld [vmem:[%s3 + $0xc] sm:$0xf]
        %v478 = vld [vmem:[%s4] sm:$0x1]
        %v480 = vperm.slane %v478, 0
        %v486 = vunpack.c.l.b16 %v474
        %v487 = vunpack.c.l.b16 %v475
        %v488 = vunpack.c.l.b16 %v476
        %v489 = vunpack.c.l.b16 %v477
        %v490 = vpack.c.b16 %v487, %v486
        %v491 = vpack.c.b16 %v489, %v488
        %vm494 = vcmask 261120
        %v496 = vsel %vm494, %v441, 0
        %498 = vmatpush.bf16.msra.mxu0 0
        %499 = vmatpush.bf16.msra.mxu0 0
        %500 = vmatpush.bf16.msra.mxu0 0
        %501 = vmatpush.bf16.msra.mxu0 0
        %502 = vmatpush.bf16.msra.mxu0 0
        %503 = vmatpush.bf16.msra.mxu0 0
        %504 = vmatpush.bf16.msra.mxu0 %v491
        %505 = vmatpush.bf16.msra.mxu0 %v490
        %506 = vmatmul.bf16.gmra.mxu0 %v496
        %v507 = vpop.f32.mrf.mxu0
        %v508 = vadd.f32 %v480, %v507
        %v509 = vpop.f32.mrf.mxu0
        %510 = vdwg.mxu0
        %v511 = vpack.c.bf16 %v508, %v508
        %v512 = vlaneseq
        %v513 = vand.u32 %v512, 127
        %vm514 = vcmp.lt.s32.totalorder %v513, 10
        %v531 = vunpack.c.l.b16 %v442
        %v532 = vunpack.c.l.b16 %v443
        %v533 = vunpack.c.l.b16 %v444
        %v534 = vunpack.c.l.b16 %v445
        %v535 = vunpack.c.l.b16 %v446
        %v536 = vunpack.c.l.b16 %v447
        %v537 = vunpack.c.l.b16 %v448
        %v538 = vunpack.c.l.b16 %v449
        %v539 = vunpack.c.l.b16 %v450
        %v540 = vunpack.c.l.b16 %v451
        %v541 = vunpack.c.l.b16 %v452
        %v542 = vunpack.c.l.b16 %v453
        %v543 = vunpack.c.l.b16 %v454
        %v544 = vunpack.c.l.b16 %v455
        %v545 = vunpack.c.l.b16 %v456
        %v546 = vunpack.c.l.b16 %v457
        %v547 = vpack.c.b16 %v532, %v531
        %v548 = vpack.c.b16 %v534, %v533
        %v549 = vpack.c.b16 %v536, %v535
        %v550 = vpack.c.b16 %v538, %v537
        %v551 = vpack.c.b16 %v540, %v539
        %v552 = vpack.c.b16 %v542, %v541
        %v553 = vpack.c.b16 %v544, %v543
        %v554 = vpack.c.b16 %v546, %v545
        %vm555 = vcmask 64512
        %v557 = vsel %vm555, %v511, 0
        %v560 = vsel %vm555, %v547, 0
        %v563 = vsel %vm555, %v548, 0
        %v566 = vsel %vm555, %v549, 0
        %v569 = vsel %vm555, %v550, 0
        %v572 = vsel %vm555, %v551, 0
        %v575 = vsel %vm555, %v552, 0
        %v578 = vsel %vm555, %v553, 0
        %v581 = vsel %vm555, %v554, 0
        %583 = vmatpush.bf16.xpose.msra.mxu0 %v581
        %584 = vmatpush.bf16.xpose.msra.mxu0 %v578
        %585 = vmatpush.bf16.xpose.msra.mxu0 %v575
        %586 = vmatpush.bf16.xpose.msra.mxu0 %v572
        %587 = vmatpush.bf16.xpose.msra.mxu0 %v569
        %588 = vmatpush.bf16.xpose.msra.mxu0 %v566
        %589 = vmatpush.bf16.xpose.msra.mxu0 %v563
        %590 = vmatpush.bf16.xpose.msra.mxu0 %v560
        %591 = vmatmul.bf16.gmra.mxu0 %v557
        %v592 = vpop.f32.mrf.mxu0
        %v593 = vadd.f32 0.0, %v592
        %v594 = vpop.f32.mrf.mxu0
        %595 = vdwg.mxu0
        %v596 = vmul.f32 %v593, 0.35355338
        %v597 = vsel %vm514, 1, 0
        %vm598 = vcmp.eq.s32.totalorder %v597, 1
        %v599 = vsel %vm598, %v596, -1e+30
        %600 = vmax.xlane.f32.xlu0 %v599
        %v601 = vpop.xlane.xlu0 %600
        %v602 = vsub.f32 %v599, %v601
        %v603 = vmul.f32 %v602, 1.442695
        %v604 = vpow.pop %v603
        %605 = vadd.xlane.f32.xlu0 %v604
        %v606 = vpop.xlane.xlu0 %605
        %v607 = vrcp.pop %v606
        %v608 = vmul.f32 %v606, %v607
        %v609 = vsub.f32 1.0, %v608
        %v610 = vmul.f32 %v607, %v609
        %v611 = vadd.f32 %v607, %v610
        %vm612 = vweird.f32 %v606
        %vm613 = vweird.f32 %v607
        %vm614 = vmor %vm612, %vm613
        %v615 = vsel %vm614, %v607, %v611
        %v616 = vand.u32 2147483647, %v606
        %vm617 = vcmp.eq.f32.partialorder %v616, 8.507059e+37
        %v618 = vand.u32 %v606, 2147483648
        %v619 = vor.u32 1.1754944e-38, %v618
        %v620 = vsel %vm617, %v619, %v615
        %v621 = vmul.f32 1.0, %v620
        %v622 = vmul.f32 %v604, %v621
        %v623 = vpack.c.bf16 %v622, %v622
        %v640 = vunpack.c.l.b16 %v458
        %v641 = vunpack.c.l.b16 %v459
        %v642 = vunpack.c.l.b16 %v460
        %v643 = vunpack.c.l.b16 %v461
        %v644 = vunpack.c.l.b16 %v462
        %v645 = vunpack.c.l.b16 %v463
        %v646 = vunpack.c.l.b16 %v464
        %v647 = vunpack.c.l.b16 %v465
        %v648 = vunpack.c.l.b16 %v466
        %v649 = vunpack.c.l.b16 %v467
        %v650 = vunpack.c.l.b16 %v468
        %v651 = vunpack.c.l.b16 %v469
        %v652 = vunpack.c.l.b16 %v470
        %v653 = vunpack.c.l.b16 %v471
        %v654 = vunpack.c.l.b16 %v472
        %v655 = vunpack.c.l.b16 %v473
        %v656 = vpack.c.b16 %v641, %v640
        %v657 = vpack.c.b16 %v643, %v642
        %v658 = vpack.c.b16 %v645, %v644
        %v659 = vpack.c.b16 %v647, %v646
        %v660 = vpack.c.b16 %v649, %v648
        %v661 = vpack.c.b16 %v651, %v650
        %v662 = vpack.c.b16 %v653, %v652
        %v663 = vpack.c.b16 %v655, %v654
        %672 = vmatpush.bf16.msra.mxu0 %v663
        %673 = vmatpush.bf16.msra.mxu0 %v662
        %674 = vmatpush.bf16.msra.mxu0 %v661
        %675 = vmatpush.bf16.msra.mxu0 %v660
        %676 = vmatpush.bf16.msra.mxu0 %v659
        %677 = vmatpush.bf16.msra.mxu0 %v658
        %678 = vmatpush.bf16.msra.mxu0 %v657
        %679 = vmatpush.bf16.msra.mxu0 %v656
        %680 = vmatmul.bf16.gmra.mxu0 %v623
        %v681 = vpop.f32.mrf.mxu0
        %v682 = vadd.f32 0.0, %v681
        %v683 = vpop.f32.mrf.mxu0
        %684 = vdwg.mxu0
        %v686 = vunpack.c.l.b16 %v511
        %v687 = vpack.c.b16 %v686, %v686
        %688 = vrot.lane.b32.xlu0 %v687, 120
        %v689 = vpop.permute.xlu0 %688
        %690 = vrot.lane.b32.xlu0 %v547, 120
        %v691 = vpop.permute.xlu0 %690
        %692 = vrot.lane.b32.xlu0 %v548, 120
        %v693 = vpop.permute.xlu0 %692
        %694 = vrot.lane.b32.xlu0 %v549, 120
        %v695 = vpop.permute.xlu0 %694
        %696 = vrot.lane.b32.xlu0 %v550, 120
        %v697 = vpop.permute.xlu0 %696
        %698 = vrot.lane.b32.xlu0 %v551, 120
        %v699 = vpop.permute.xlu0 %698
        %700 = vrot.lane.b32.xlu0 %v552, 120
        %v701 = vpop.permute.xlu0 %700
        %702 = vrot.lane.b32.xlu0 %v553, 120
        %v703 = vpop.permute.xlu0 %702
        %704 = vrot.lane.b32.xlu0 %v554, 120
        %v705 = vpop.permute.xlu0 %704
        %v707 = vsel %vm555, %v689, 0
        %v710 = vsel %vm555, %v691, 0
        %v713 = vsel %vm555, %v693, 0
        %v716 = vsel %vm555, %v695, 0
        %v719 = vsel %vm555, %v697, 0
        %v722 = vsel %vm555, %v699, 0
        %v725 = vsel %vm555, %v701, 0
        %v728 = vsel %vm555, %v703, 0
        %v731 = vsel %vm555, %v705, 0
        %733 = vmatpush.bf16.xpose.msra.mxu0 %v731
        %734 = vmatpush.bf16.xpose.msra.mxu0 %v728
        %735 = vmatpush.bf16.xpose.msra.mxu0 %v725
        %736 = vmatpush.bf16.xpose.msra.mxu0 %v722
        %737 = vmatpush.bf16.xpose.msra.mxu0 %v719
        %738 = vmatpush.bf16.xpose.msra.mxu0 %v716
        %739 = vmatpush.bf16.xpose.msra.mxu0 %v713
        %740 = vmatpush.bf16.xpose.msra.mxu0 %v710
        %741 = vmatmul.bf16.gmra.mxu0 %v707
        %v742 = vpop.f32.mrf.mxu0
        %v743 = vadd.f32 0.0, %v742
        %v744 = vpop.f32.mrf.mxu0
        %745 = vdwg.mxu0
        %v746 = vmul.f32 %v743, 0.35355338
        %v747 = vsel %vm598, %v746, -1e+30
        %748 = vmax.xlane.f32.xlu0 %v747
        %v749 = vpop.xlane.xlu0 %748
        %v750 = vsub.f32 %v747, %v749
        %v751 = vmul.f32 %v750, 1.442695
        %v752 = vpow.pop %v751
        %753 = vadd.xlane.f32.xlu0 %v752
        %v754 = vpop.xlane.xlu0 %753
        %v755 = vrcp.pop %v754
        %v756 = vmul.f32 %v754, %v755
        %v757 = vsub.f32 1.0, %v756
        %v758 = vmul.f32 %v755, %v757
        %v759 = vadd.f32 %v755, %v758
        %vm760 = vweird.f32 %v754
        %vm761 = vweird.f32 %v755
        %vm762 = vmor %vm760, %vm761
        %v763 = vsel %vm762, %v755, %v759
        %v764 = vand.u32 2147483647, %v754
        %vm765 = vcmp.eq.f32.partialorder %v764, 8.507059e+37
        %v766 = vand.u32 %v754, 2147483648
        %v767 = vor.u32 1.1754944e-38, %v766
        %v768 = vsel %vm765, %v767, %v763
        %v769 = vmul.f32 1.0, %v768
        %v770 = vmul.f32 %v752, %v769
        %v771 = vpack.c.bf16 %v770, %v770
        %772 = vrot.lane.b32.xlu0 %v656, 120
        %v773 = vpop.permute.xlu0 %772
        %774 = vrot.lane.b32.xlu0 %v657, 120
        %v775 = vpop.permute.xlu0 %774
        %776 = vrot.lane.b32.xlu0 %v658, 120
        %v777 = vpop.permute.xlu0 %776
        %778 = vrot.lane.b32.xlu0 %v659, 120
        %v779 = vpop.permute.xlu0 %778
        %780 = vrot.lane.b32.xlu0 %v660, 120
        %v781 = vpop.permute.xlu0 %780
        %782 = vrot.lane.b32.xlu0 %v661, 120
        %v783 = vpop.permute.xlu0 %782
        %784 = vrot.lane.b32.xlu0 %v662, 120
        %v785 = vpop.permute.xlu0 %784
        %786 = vrot.lane.b32.xlu0 %v663, 120
        %v787 = vpop.permute.xlu0 %786
        %796 = vmatpush.bf16.msra.mxu0 %v787
        %797 = vmatpush.bf16.msra.mxu0 %v785
        %798 = vmatpush.bf16.msra.mxu0 %v783
        %799 = vmatpush.bf16.msra.mxu0 %v781
        %800 = vmatpush.bf16.msra.mxu0 %v779
        %801 = vmatpush.bf16.msra.mxu0 %v777
        %802 = vmatpush.bf16.msra.mxu0 %v775
        %803 = vmatpush.bf16.msra.mxu0 %v773
        %804 = vmatmul.bf16.gmra.mxu0 %v771
        %v805 = vpop.f32.mrf.mxu0
        %v806 = vadd.f32 0.0, %v805
        %v807 = vpop.f32.mrf.mxu0
        %808 = vdwg.mxu0
        %v809 = vadd.f32 %v622, %v770
        %810 = vrot.lane.b32.xlu0 %v687, 112
        %v811 = vpop.permute.xlu0 %810
        %812 = vrot.lane.b32.xlu0 %v547, 112
        %v813 = vpop.permute.xlu0 %812
        %814 = vrot.lane.b32.xlu0 %v548, 112
        %v815 = vpop.permute.xlu0 %814
        %816 = vrot.lane.b32.xlu0 %v549, 112
        %v817 = vpop.permute.xlu0 %816
        %818 = vrot.lane.b32.xlu0 %v550, 112
        %v819 = vpop.permute.xlu0 %818
        %820 = vrot.lane.b32.xlu0 %v551, 112
        %v821 = vpop.permute.xlu0 %820
        %822 = vrot.lane.b32.xlu0 %v552, 112
        %v823 = vpop.permute.xlu0 %822
        %824 = vrot.lane.b32.xlu0 %v553, 112
        %v825 = vpop.permute.xlu0 %824
        %826 = vrot.lane.b32.xlu0 %v554, 112
        %v827 = vpop.permute.xlu0 %826
        %v829 = vsel %vm555, %v811, 0
        %v832 = vsel %vm555, %v813, 0
        %v835 = vsel %vm555, %v815, 0
        %v838 = vsel %vm555, %v817, 0
        %v841 = vsel %vm555, %v819, 0
        %v844 = vsel %vm555, %v821, 0
        %v847 = vsel %vm555, %v823, 0
        %v850 = vsel %vm555, %v825, 0
        %v853 = vsel %vm555, %v827, 0
        %855 = vmatpush.bf16.xpose.msra.mxu0 %v853
        %856 = vmatpush.bf16.xpose.msra.mxu0 %v850
        %857 = vmatpush.bf16.xpose.msra.mxu0 %v847
        %858 = vmatpush.bf16.xpose.msra.mxu0 %v844
        %859 = vmatpush.bf16.xpose.msra.mxu0 %v841
        %860 = vmatpush.bf16.xpose.msra.mxu0 %v838
        %861 = vmatpush.bf16.xpose.msra.mxu0 %v835
        %862 = vmatpush.bf16.xpose.msra.mxu0 %v832
        %863 = vmatmul.bf16.gmra.mxu0 %v829
        %v864 = vpop.f32.mrf.mxu0
        %v865 = vadd.f32 0.0, %v864
        %v866 = vpop.f32.mrf.mxu0
        %867 = vdwg.mxu0
        %v868 = vmul.f32 %v865, 0.35355338
        %v869 = vsel %vm598, %v868, -1e+30
        %870 = vmax.xlane.f32.xlu0 %v869
        %v871 = vpop.xlane.xlu0 %870
        %v872 = vsub.f32 %v869, %v871
        %v873 = vmul.f32 %v872, 1.442695
        %v874 = vpow.pop %v873
        %875 = vadd.xlane.f32.xlu0 %v874
        %v876 = vpop.xlane.xlu0 %875
        %v877 = vrcp.pop %v876
        %v878 = vmul.f32 %v876, %v877
        %v879 = vsub.f32 1.0, %v878
        %v880 = vmul.f32 %v877, %v879
        %v881 = vadd.f32 %v877, %v880
        %vm882 = vweird.f32 %v876
        %vm883 = vweird.f32 %v877
        %vm884 = vmor %vm882, %vm883
        %v885 = vsel %vm884, %v877, %v881
        %v886 = vand.u32 2147483647, %v876
        %vm887 = vcmp.eq.f32.partialorder %v886, 8.507059e+37
        %v888 = vand.u32 %v876, 2147483648
        %v889 = vor.u32 1.1754944e-38, %v888
        %v890 = vsel %vm887, %v889, %v885
        %v891 = vmul.f32 1.0, %v890
        %v892 = vmul.f32 %v874, %v891
        %v893 = vpack.c.bf16 %v892, %v892
        %894 = vrot.lane.b32.xlu0 %v656, 112
        %v895 = vpop.permute.xlu0 %894
        %896 = vrot.lane.b32.xlu0 %v657, 112
        %v897 = vpop.permute.xlu0 %896
        %898 = vrot.lane.b32.xlu0 %v658, 112
        %v899 = vpop.permute.xlu0 %898
        %900 = vrot.lane.b32.xlu0 %v659, 112
        %v901 = vpop.permute.xlu0 %900
        %902 = vrot.lane.b32.xlu0 %v660, 112
        %v903 = vpop.permute.xlu0 %902
        %904 = vrot.lane.b32.xlu0 %v661, 112
        %v905 = vpop.permute.xlu0 %904
        %906 = vrot.lane.b32.xlu0 %v662, 112
        %v907 = vpop.permute.xlu0 %906
        %908 = vrot.lane.b32.xlu0 %v663, 112
        %v909 = vpop.permute.xlu0 %908
        %918 = vmatpush.bf16.msra.mxu0 %v909
        %919 = vmatpush.bf16.msra.mxu0 %v907
        %920 = vmatpush.bf16.msra.mxu0 %v905
        %921 = vmatpush.bf16.msra.mxu0 %v903
        %922 = vmatpush.bf16.msra.mxu0 %v901
        %923 = vmatpush.bf16.msra.mxu0 %v899
        %924 = vmatpush.bf16.msra.mxu0 %v897
        %925 = vmatpush.bf16.msra.mxu0 %v895
        %926 = vmatmul.bf16.gmra.mxu0 %v893
        %v927 = vpop.f32.mrf.mxu0
        %v928 = vadd.f32 0.0, %v927
        %v929 = vpop.f32.mrf.mxu0
        %930 = vdwg.mxu0
        %v931 = vadd.f32 %v809, %v892
        %932 = vrot.lane.b32.xlu0 %v687, 104
        %v933 = vpop.permute.xlu0 %932
        %934 = vrot.lane.b32.xlu0 %v547, 104
        %v935 = vpop.permute.xlu0 %934
        %936 = vrot.lane.b32.xlu0 %v548, 104
        %v937 = vpop.permute.xlu0 %936
        %938 = vrot.lane.b32.xlu0 %v549, 104
        %v939 = vpop.permute.xlu0 %938
        %940 = vrot.lane.b32.xlu0 %v550, 104
        %v941 = vpop.permute.xlu0 %940
        %942 = vrot.lane.b32.xlu0 %v551, 104
        %v943 = vpop.permute.xlu0 %942
        %944 = vrot.lane.b32.xlu0 %v552, 104
        %v945 = vpop.permute.xlu0 %944
        %946 = vrot.lane.b32.xlu0 %v553, 104
        %v947 = vpop.permute.xlu0 %946
        %948 = vrot.lane.b32.xlu0 %v554, 104
        %v949 = vpop.permute.xlu0 %948
        %v951 = vsel %vm555, %v933, 0
        %v954 = vsel %vm555, %v935, 0
        %v957 = vsel %vm555, %v937, 0
        %v960 = vsel %vm555, %v939, 0
        %v963 = vsel %vm555, %v941, 0
        %v966 = vsel %vm555, %v943, 0
        %v969 = vsel %vm555, %v945, 0
        %v972 = vsel %vm555, %v947, 0
        %v975 = vsel %vm555, %v949, 0
        %977 = vmatpush.bf16.xpose.msra.mxu0 %v975
        %978 = vmatpush.bf16.xpose.msra.mxu0 %v972
        %979 = vmatpush.bf16.xpose.msra.mxu0 %v969
        %980 = vmatpush.bf16.xpose.msra.mxu0 %v966
        %981 = vmatpush.bf16.xpose.msra.mxu0 %v963
        %982 = vmatpush.bf16.xpose.msra.mxu0 %v960
        %983 = vmatpush.bf16.xpose.msra.mxu0 %v957
        %984 = vmatpush.bf16.xpose.msra.mxu0 %v954
        %985 = vmatmul.bf16.gmra.mxu0 %v951
        %v986 = vpop.f32.mrf.mxu0
        %v987 = vadd.f32 0.0, %v986
        %v988 = vpop.f32.mrf.mxu0
        %989 = vdwg.mxu0
        %v990 = vmul.f32 %v987, 0.35355338
        %v991 = vsel %vm598, %v990, -1e+30
        %992 = vmax.xlane.f32.xlu0 %v991
        %v993 = vpop.xlane.xlu0 %992
        %v994 = vsub.f32 %v991, %v993
        %v995 = vmul.f32 %v994, 1.442695
        %v996 = vpow.pop %v995
        %997 = vadd.xlane.f32.xlu0 %v996
        %v998 = vpop.xlane.xlu0 %997
        %v999 = vrcp.pop %v998
        %v1000 = vmul.f32 %v998, %v999
        %v1001 = vsub.f32 1.0, %v1000
        %v1002 = vmul.f32 %v999, %v1001
        %v1003 = vadd.f32 %v999, %v1002
        %vm1004 = vweird.f32 %v998
        %vm1005 = vweird.f32 %v999
        %vm1006 = vmor %vm1004, %vm1005
        %v1007 = vsel %vm1006, %v999, %v1003
        %v1008 = vand.u32 2147483647, %v998
        %vm1009 = vcmp.eq.f32.partialorder %v1008, 8.507059e+37
        %v1010 = vand.u32 %v998, 2147483648
        %v1011 = vor.u32 1.1754944e-38, %v1010
        %v1012 = vsel %vm1009, %v1011, %v1007
        %v1013 = vmul.f32 1.0, %v1012
        %v1014 = vmul.f32 %v996, %v1013
        %v1015 = vpack.c.bf16 %v1014, %v1014
        %1016 = vrot.lane.b32.xlu0 %v656, 104
        %v1017 = vpop.permute.xlu0 %1016
        %1018 = vrot.lane.b32.xlu0 %v657, 104
        %v1019 = vpop.permute.xlu0 %1018
        %1020 = vrot.lane.b32.xlu0 %v658, 104
        %v1021 = vpop.permute.xlu0 %1020
        %1022 = vrot.lane.b32.xlu0 %v659, 104
        %v1023 = vpop.permute.xlu0 %1022
        %1024 = vrot.lane.b32.xlu0 %v660, 104
        %v1025 = vpop.permute.xlu0 %1024
        %1026 = vrot.lane.b32.xlu0 %v661, 104
        %v1027 = vpop.permute.xlu0 %1026
        %1028 = vrot.lane.b32.xlu0 %v662, 104
        %v1029 = vpop.permute.xlu0 %1028
        %1030 = vrot.lane.b32.xlu0 %v663, 104
        %v1031 = vpop.permute.xlu0 %1030
        %1040 = vmatpush.bf16.msra.mxu0 %v1031
        %1041 = vmatpush.bf16.msra.mxu0 %v1029
        %1042 = vmatpush.bf16.msra.mxu0 %v1027
        %1043 = vmatpush.bf16.msra.mxu0 %v1025
        %1044 = vmatpush.bf16.msra.mxu0 %v1023
        %1045 = vmatpush.bf16.msra.mxu0 %v1021
        %1046 = vmatpush.bf16.msra.mxu0 %v1019
        %1047 = vmatpush.bf16.msra.mxu0 %v1017
        %1048 = vmatmul.bf16.gmra.mxu0 %v1015
        %v1049 = vpop.f32.mrf.mxu0
        %v1050 = vadd.f32 0.0, %v1049
        %v1051 = vpop.f32.mrf.mxu0
        %1052 = vdwg.mxu0
        %v1053 = vadd.f32 %v931, %v1014
        %1055 = vrot.lane.b32.xlu0 %v806, 8
        %v1056 = vpop.permute.xlu0 %1055
        %1059 = vrot.lane.b32.xlu0 %v928, 16
        %v1060 = vpop.permute.xlu0 %1059
        %1063 = vrot.lane.b32.xlu0 %v1050, 24
        %v1064 = vpop.permute.xlu0 %1063
        %v1066 = vsel %vm555, %v682, %v1056
        %vm1067 = vcmask 130048
        %v1068 = vsel %vm1067, %v1066, %v1060
        %vm1069 = vcmask 195584
        %v1070 = vsel %vm1069, %v1068, %v1064
        %v1071 = vpack.c.bf16 %v1070, %v1070
        %v1072 = vld [vmem:[%s5] sm:$0xf]
        %v1073 = vld [vmem:[%s5 + $0x4] sm:$0xf]
        %v1074 = vld [vmem:[%s5 + $0x8] sm:$0xf]
        %v1075 = vld [vmem:[%s5 + $0xc] sm:$0xf]
        %v1076 = vld [vmem:[%s6] sm:$0x1]
        %v1078 = vperm.slane %v1076, 0
        %v1084 = vunpack.c.l.b16 %v1072
        %v1085 = vunpack.c.l.b16 %v1073
        %v1086 = vunpack.c.l.b16 %v1074
        %v1087 = vunpack.c.l.b16 %v1075
        %v1088 = vpack.c.b16 %v1085, %v1084
        %v1089 = vpack.c.b16 %v1087, %v1086
        %v1093 = vsel %vm494, %v1071, 0
        %1095 = vmatpush.bf16.msra.mxu0 0
        %1096 = vmatpush.bf16.msra.mxu0 0
        %1097 = vmatpush.bf16.msra.mxu0 0
        %1098 = vmatpush.bf16.msra.mxu0 0
        %1099 = vmatpush.bf16.msra.mxu0 0
        %1100 = vmatpush.bf16.msra.mxu0 0
        %1101 = vmatpush.bf16.msra.mxu0 %v1089
        %1102 = vmatpush.bf16.msra.mxu0 %v1088
        %1103 = vmatmul.bf16.gmra.mxu0 %v1093
        %v1104 = vpop.f32.mrf.mxu0
        %v1105 = vadd.f32 %v1078, %v1104
        %v1106 = vpop.f32.mrf.mxu0
        %1107 = vdwg.mxu0
        %v1108 = vadd.f32 %v1105, %v440
        %v1109 = vsel %vm494, %v1108, 0.0
        %1110 = vadd.xlane.f32.xlu0 %v1109
        %v1111 = vpop.xlane.xlu0 %1110
        %v1112 = vrcp.pop 32.0
        %v1113 = vmul.f32 32.0, %v1112
        %v1114 = vsub.f32 1.0, %v1113
        %v1115 = vmul.f32 %v1112, %v1114
        %v1116 = vadd.f32 %v1112, %v1115
        %vm1117 = vweird.f32 %v1112
        %v1118 = vsel %vm1117, %v1112, %v1116
        %v1119 = vmul.f32 %v1111, %v1118
        %v1120 = vsub.f32 %v1108, %v1119
        %v1121 = vmul.f32 %v1120, %v1120
        %v1122 = vsel %vm494, %v1121, 0.0
        %1123 = vadd.xlane.f32.xlu0 %v1122
        %v1124 = vpop.xlane.xlu0 %1123
        %v1125 = vmul.f32 %v1124, %v1118
        %v1126 = vadd.f32 %v1125, 1e-05
        %v1127 = vrsqrt.pop %v1126
        %v1128 = vmul.f32 %v1127, %v1126
        %v1129 = vmul.f32 %v1128, %v1127
        %v1130 = vmul.f32 0.5, %v1129
        %v1131 = vsub.f32 1.5, %v1130
        %v1132 = vmul.f32 %v1127, %v1131
        %vm1133 = vweird.f32 %v1126
        %vm1134 = vweird.f32 %v1127
        %vm1135 = vmor %vm1133, %vm1134
        %v1136 = vsel %vm1135, %v1127, %v1132
        %v1137 = vmul.f32 %v1120, %v1136
        %v1138 = vld [vmem:[%s7] sm:$0x1]
        %v1140 = vperm.slane %v1138, 0
        %v1142 = vmul.f32 %v1137, %v1140
        %v1143 = vld [vmem:[%s8] sm:$0x1]
        %v1145 = vperm.slane %v1143, 0
        %v1147 = vadd.f32 %v1142, %v1145
        %1148 = vst.msk [vmem:[%s438] sm:$0xff] %vm494, %v1147
        %v1149 = vmul.f32 %v1053, 0.25
        %1150 = vst [vmem:[%s414] sm:$0xff] %v1149
        %p1151 = scmp.lt.s32.totalorder %s29, 1
        %s1152 = scalar_select %p1151, %s29, 1
        %p1153 = scmp.lt.s32.totalorder %s30, 0
        %s1154 = scalar_select %p1153, %s30, 0
        %s1155 = sadd.s32 %s1154, %s1152
        %s1156 = smul.addr %s1155, 8
        %s1157 = scalar_lea.vmem %s9, %s1156
        %s1158 = sand.u32 %s281, 1
        %s1159 = scalar_lea.sflag [#allocation3], %s1158
        %s1160 = sand.u32 %s281, 1
        %s1161 = smul.addr %s1160, 8
        %s1162 = scalar_lea.vmem [#allocation2], %s1161
        // Predicated region
        $region57: #{transformer_decoder_layer.4} parent=55 // pred_check
          %p1163 = pneg %p263
        $region58: #{transformer_decoder_layer.4} parent=55 // pred_check_branch
          %1165 = sbr.rel (%p1163) target = $region60
        $region59: #{transformer_decoder_layer.4} parent=55 // pred_region
          _
        $region60: #{transformer_decoder_layer.4} parent=55 // pred_fallthru
          _
        // Predicated region
        $region61: #{transformer_decoder_layer.4} parent=55 // pred_check
          %p1166 = pneg %p291
        $region62: #{transformer_decoder_layer.4} parent=55 // pred_check_branch
          %1168 = sbr.rel (%p1166) target = $region64
        $region63: #{transformer_decoder_layer.4} parent=55 // pred_region
          %1170 = vsyncadd %s1159, 0
          %s1171 = sadd.s32 %s30, %s29
          %s1172 = smul.addr %s1171, 8
          %s1173 = scalar_lea.hbm %s10, %s1172
          %s1175 = sshll.u32 %s1162, 4
          %s1176 = int_to_ptr.vmem [resolvable:$true] %s1175
          %s1177 = sshll.u32 %s1173, 4
          %s1178 = int_to_ptr.hbm [resolvable:$true] %s1177
          %1180 = dma.vmem_to_hbm [thread:$0]  %s1176, 128, %s1178, %s1159
        $region64: #{transformer_decoder_layer.4} parent=55 // pred_fallthru
          _
      $region56: #{transformer_decoder_layer.4} parent=5 // pred_fallthru
        _
      %p1181 = scmp.le.s32.totalorder 2, %s20
      // Predicated region
      $region65: #{transformer_decoder_layer.4} parent=5 // pred_check
        %p1182 = pneg %p1181
      $region66: #{transformer_decoder_layer.4} parent=5 // pred_check_branch
        %1184 = sbr.rel (%p1182) target = $region68
      $region67: #{transformer_decoder_layer.4} parent=5 // pred_region
        %s1185 = ssub.s32 %s20, 2
        // Predicated region
        $region69: #{transformer_decoder_layer.4} parent=67 // pred_check
          %p1186 = pneg %p269
        $region70: #{transformer_decoder_layer.4} parent=67 // pred_check_branch
          %1188 = sbr.rel (%p1186) target = $region72
        $region71: #{transformer_decoder_layer.4} parent=67 // pred_region
          %p1189 = scmp.lt.s32.totalorder %s31, 1
          %s1190 = scalar_select %p1189, %s31, 1
          %p1191 = scmp.lt.s32.totalorder %s32, 0
          %s1192 = scalar_select %p1191, %s32, 0
          %s1193 = sadd.s32 %s1192, %s1190
          %s1194 = smul.addr %s1193, 8
          %s1195 = scalar_lea.vmem %s9, %s1194
        $region72: #{transformer_decoder_layer.4} parent=67 // pred_fallthru
          _
        // Predicated region
        $region73: #{transformer_decoder_layer.4} parent=67 // pred_check
          %p1196 = pneg %p297
        $region74: #{transformer_decoder_layer.4} parent=67 // pred_check_branch
          %1198 = sbr.rel (%p1196) target = $region76
        $region75: #{transformer_decoder_layer.4} parent=67 // pred_region
          %s1199 = sand.u32 %s282, 1
          %s1200 = scalar_lea.sflag [#allocation3], %s1199
          %s1201 = sand.u32 %s282, 1
          %s1202 = smul.addr %s1201, 8
          %s1203 = scalar_lea.vmem [#allocation2], %s1202
          %1205 = dma.done %s1200, 128
        $region76: #{transformer_decoder_layer.4} parent=67 // pred_fallthru
          _
      $region68: #{transformer_decoder_layer.4} parent=5 // pred_fallthru
        _
    $region6: #{transformer_decoder_layer.4} parent=1 // loop_footer
      %s24 = sadd.s32 1, %s20
    $region7: #{transformer_decoder_layer.4} parent=1 // loop_footer_branch
      %19 = sbr.rel target = $region3
    $region8: #{transformer_decoder_layer.4} parent=1 // loop_exit
      _
    %1206 = vsyncpa [#allocation3], 1
    %s1207 = scalar_lea.sflag [#allocation3], 1
    %1208 = vsyncpa %s1207, 1

</llo_original>
